<compile_context>
chip_gen: v7x
topology: tpu7x:2x2x1
jax: 0.10.0
libtpu: 0.0.40
codegen_flags: <defaults>
</compile_context>

<pallas_src>
import functools

import jax
import jax.numpy as jnp
from jax import lax
from jax.experimental import pallas as pl
from jax.experimental.pallas import tpu as pltpu


def _involution_kernel(K, S, pad, TH, Wo, C, Hps, has_xw, *refs):
    """Grid = (batch, output-row tile)."""
    if has_xw:
        (xsrc_ref, xw_ref, w1_ref, b1_ref, w2e_ref, b2e_ref,
         out_ref, acc_ref) = refs
    else:
        (xsrc_ref, w1_ref, b1_ref, w2e_ref, b2e_ref,
         out_ref, acc_ref) = refs
        xw_ref = None

    h0 = pl.multiple_of(pl.program_id(1) * TH, TH)   # first output row of tile

    # ---- per-pixel kernel generation --------------------------------------
    # conv1 (1x1, BN folded) + ReLU, then conv2 fused with the group->channel
    # expansion: a single (TH*Wo, Cr) @ (Cr, K^2*C) lane-dense matmul.
    if has_xw:
        xw2d = xw_ref[0].reshape(TH * Wo, C)
    else:
        # stride == 1: conv input is just the interior of the padded image.
        xw2d = xsrc_ref[0, pl.ds(h0 + pad, TH), pad:pad + Wo, :].reshape(
            TH * Wo, C)
    feat = jnp.dot(xw2d, w1_ref[...],
                   preferred_element_type=jnp.float32) + b1_ref[...]
    feat = jnp.maximum(feat, 0.0)
    wexp_all = jnp.dot(feat, w2e_ref[...],
                       preferred_element_type=jnp.float32) + b2e_ref[...]
    # wexp_all[:, k*C:(k+1)*C] = tap k's per-pixel kernel, already broadcast
    # to all group_channels channels.

    # ---- involution: weighted sum over the K*K shifted windows -------------
    acc_ref[...] = jnp.zeros_like(acc_ref)
    for dh in range(K):
        a, p = divmod(dh, S)
        for dw in range(K):
            b_, q = divmod(dw, S)
            k = dh * K + dw
            wk = wexp_all[:, k * C:(k + 1) * C].reshape(TH, Wo, C)
            # unit-stride window read from the (p,q) phase plane
            row = (p * S + q) * Hps + h0 + a
            xs = xsrc_ref[0, pl.ds(row, TH), b_:b_ + Wo, :]
            acc_ref[...] += wk * xs
    out_ref[0] = acc_ref[...].astype(out_ref.dtype)


def involution_pallas(x_nchw, w1f, b1f, w2, b2, *, kernel_size, stride,
                      group_channels=16, block_h=None, out_dtype=jnp.float32):
    """Involution forward. x_nchw: (B,C,H,W). w1f/b1f: conv1 with BN(eval)
    folded, shapes (Cr,C)/(Cr,). w2/b2: conv2, shapes (K^2*G,Cr)/(K^2*G,)."""
    B, C, H, W = x_nchw.shape
    K, S = kernel_size, stride
    pad = (K - 1) // 2
    assert C % group_channels == 0
    groups = C // group_channels
    K2 = K * K
    Ho = (H + 2 * pad - K) // S + 1
    Wo = (W + 2 * pad - K) // S + 1

    x = jnp.transpose(x_nchw, (0, 2, 3, 1)).astype(jnp.float32)      # NHWC
    # NOTE: for production use, C should be a multiple of 128 so the lane dim
    # is dense; C=64 (test shape) half-masks the VPU/stores but is correct.

    has_xw = S > 1
    if has_xw:                                       # avgpool(x) feeds conv1
        assert H % S == 0 and W % S == 0
        xw = x.reshape(B, H // S, S, W // S, S, C).mean(axis=(2, 4))
        assert xw.shape[1] == Ho and xw.shape[2] == Wo

    # Row-tile size: keep the largest per-tile temporary (the fused per-pixel
    # kernels, TH*Wo*K^2*C f32) around ~2 MiB so one grid step comfortably
    # fits the smallest VMEM budget (v7x: 64 MiB physical).
    if block_h is None:
        budget = 2 * 1024 * 1024
        block_h = max(1, budget // max(1, Wo * K2 * C * 4))
    TH = int(min(block_h, Ho))
    if TH >= 8:
        TH -= TH % 8
    n_th = -(-Ho // TH)

    # Space-to-depth phase split of the padded image (unit-stride tap reads),
    # padded with enough rows that a partial last row-tile never reads OOB.
    a_max = (K - 1) // S
    Hps = max(-(-(H + 2 * pad) // S), n_th * TH + a_max)
    Wps = max(-(-(W + 2 * pad) // S), Wo + a_max)
    xpad = jnp.pad(x, ((0, 0), (pad, Hps * S - H - pad),
                       (pad, Wps * S - W - pad), (0, 0)))
    xsrc = xpad.reshape(B, Hps, S, Wps, S, C).transpose(0, 2, 4, 1, 3, 5)
    xsrc = xsrc.reshape(B, S * S * Hps, Wps, C)      # phase (p*S+q) row blocks

    # conv1 weights (BN folded) and conv2 fused with the group->channel expand.
    w1t = jnp.asarray(w1f, jnp.float32).T                     # (C, Cr)
    b1r = jnp.asarray(b1f, jnp.float32).reshape(1, -1)        # (1, Cr)
    Cr = w1t.shape[1]
    w2t = jnp.asarray(w2, jnp.float32).T                      # (Cr, K2*G)
    g_of_c = jnp.arange(C) // group_channels
    col_idx = (g_of_c[None, :] * K2 + jnp.arange(K2)[:, None]).reshape(-1)
    w2e = jnp.take(w2t, col_idx, axis=1)                      # (Cr, K2*C)
    b2e = jnp.take(jnp.asarray(b2, jnp.float32), col_idx).reshape(1, -1)

    kernel = functools.partial(_involution_kernel, K, S, pad, TH, Wo, C, Hps,
                               has_xw)

    in_specs = [pl.BlockSpec((1, S * S * Hps, Wps, C),
                             lambda b, t: (b, 0, 0, 0))]      # resident per b
    args = [xsrc]
    if has_xw:
        in_specs.append(pl.BlockSpec((1, TH, Wo, C), lambda b, t: (b, t, 0, 0)))
        args.append(xw)
    in_specs += [
        pl.BlockSpec((C, Cr), lambda b, t: (0, 0)),           # conv1 w
        pl.BlockSpec((1, Cr), lambda b, t: (0, 0)),           # conv1 b
        pl.BlockSpec((Cr, K2 * C), lambda b, t: (0, 0)),      # fused conv2+expand
        pl.BlockSpec((1, K2 * C), lambda b, t: (0, 0)),       # fused bias
    ]
    args += [w1t, b1r, w2e, b2e]

    out_nhwc = pl.pallas_call(
        kernel,
        out_shape=jax.ShapeDtypeStruct((B, Ho, Wo, C), out_dtype),
        grid_spec=pltpu.PrefetchScalarGridSpec(
            num_scalar_prefetch=0,
            grid=(B, n_th),
            in_specs=in_specs,
            out_specs=pl.BlockSpec((1, TH, Wo, C), lambda b, t: (b, t, 0, 0)),
            scratch_shapes=[pltpu.VMEM((TH, Wo, C), jnp.float32)],
        ),
        compiler_params=pltpu.CompilerParams(
            # batch / row tiles are independent -> shard across v7x's 2 TCs.
            dimension_semantics=("parallel", "parallel"),
            # above default scoped limits (v5e 16 MiB, v6e/v7x 32 MiB), with
            # headroom under v7x's 64 MiB physical VMEM.
            vmem_limit_bytes=48 * 1024 * 1024,
        ),
    )(*args)

    return jnp.transpose(out_nhwc, (0, 3, 1, 2))               # back to NCHW


def involution_ref(x, w1f, b1f, w2, b2, K, S, groups, gch):
    """Pure-JAX NCHW reference mirroring the PyTorch forward (BN folded)."""
    B, C, H, W = x.shape
    pad = (K - 1) // 2
    xw = x if S == 1 else x.reshape(B, C, H // S, S, W // S, S).mean(axis=(3, 5))
    feat = jnp.einsum('bchw,oc->bohw', xw, w1f,
                      precision=lax.Precision.HIGHEST) + b1f[None, :, None, None]
    feat = jnp.maximum(feat, 0.0)
    wk = jnp.einsum('bchw,oc->bohw', feat, w2,
                    precision=lax.Precision.HIGHEST) + b2[None, :, None, None]
    Ho = (H + 2 * pad - K) // S + 1
    Wo = (W + 2 * pad - K) // S + 1
    K2 = K * K
    wk = wk.reshape(B, groups, K2, Ho, Wo)
    xp = jnp.pad(x, ((0, 0), (0, 0), (pad, pad), (pad, pad)))
    out = jnp.zeros((B, C, Ho, Wo), jnp.float32)
    for dh in range(K):
        for dw in range(K):
            k = dh * K + dw
            xs = xp[:, :, dh:dh + (Ho - 1) * S + 1:S, dw:dw + (Wo - 1) * S + 1:S]
            wexp = jnp.repeat(wk[:, :, k], gch, axis=1)
            out = out + wexp * xs
    return out


if __name__ == "__main__":
    # Small shapes consistent with the module: channels must be a multiple of
    # group_channels (16) and of reduction_ratio (4).
    B, C, H, W = 2, 64, 16, 16
    gch = 16
    groups = C // gch
    Cr = C // 4
    eps = 1e-5

    key = jax.random.PRNGKey(0)

    # (K, S, forced row-tile): block_h=8 on the stride-1 case exercises the
    # spatial-tiling path (2 row tiles); stride-2 exercises avgpool + phases.
    for (K, S, block_h) in ((3, 1, 8), (3, 2, None)):
        K2 = K * K
        key, *ks = jax.random.split(key, 9)
        x = jax.random.normal(ks[0], (B, C, H, W), jnp.float32)

        # conv1 (1x1, no bias) + BN(eval) params, conv2 (1x1, with bias)
        w1 = 0.1 * jax.random.normal(ks[1], (Cr, C), jnp.float32)
        gamma = 1.0 + 0.1 * jax.random.normal(ks[2], (Cr,), jnp.float32)
        beta = 0.1 * jax.random.normal(ks[3], (Cr,), jnp.float32)
        rmean = 0.1 * jax.random.normal(ks[4], (Cr,), jnp.float32)
        rvar = 1.0 + 0.1 * jax.random.uniform(ks[5], (Cr,), jnp.float32)
        w2 = 0.1 * jax.random.normal(ks[6], (K2 * groups, Cr), jnp.float32)
        b2 = 0.1 * jax.random.normal(ks[7], (K2 * groups,), jnp.float32)

        # Fold BN (eval mode) into conv1.
        scale = gamma / jnp.sqrt(rvar + eps)
        w1f = w1 * scale[:, None]
        b1f = beta - rmean * scale

        out = involution_pallas(x, w1f, b1f, w2, b2, kernel_size=K, stride=S,
                                block_h=block_h)
        out = jax.block_until_ready(out)

        ref = involution_ref(x, w1f, b1f, w2, b2, K, S, groups, gch)
        assert out.shape == ref.shape
        max_err = float(jnp.max(jnp.abs(out - ref)))
        # Kernel matmuls use DEFAULT precision (single bf16 MXU pass), the
        # reference uses HIGHEST -> allow a few e-3 of drift.
        assert jnp.allclose(out, ref, atol=2e-2, rtol=2e-2), (
            f"K={K} S={S} max_err={max_err}")

    print("KERNEL_OK")
</pallas_src>

<mosaic_0001>
module attributes {stable_mosaic.version = 11 : i64} {
  func.func @_involution_kernel(%arg0: i32, %arg1: i32, %arg2: memref<1x18x18x64xf32, #tpu.memory_space<vmem>>, %arg3: memref<64x16xf32, #tpu.memory_space<vmem>>, %arg4: memref<1x16xf32, #tpu.memory_space<vmem>>, %arg5: memref<16x576xf32, #tpu.memory_space<vmem>>, %arg6: memref<1x576xf32, #tpu.memory_space<vmem>>, %arg7: memref<1x8x16x64xf32, #tpu.memory_space<vmem>>, %arg8: memref<8x16x64xf32, #tpu.memory_space<vmem>>) attributes {dimension_semantics = [#tpu.dimension_semantics<parallel>, #tpu.dimension_semantics<parallel>], iteration_bounds = array<i64: 2, 2>, scalar_prefetch = 0 : i64, scratch_operands = 1 : i64, tpu.core_type = #tpu.core_type<tc>, window_params = [{transform_indices = @transform_0, window_bounds = array<i64: 1, 18, 18, 64>}, {pipeline_mode = #tpu.pipeline_mode<synchronous>, transform_indices = @transform_1, window_bounds = array<i64: 64, 16>}, {pipeline_mode = #tpu.pipeline_mode<synchronous>, transform_indices = @transform_2, window_bounds = array<i64: 1, 16>}, {pipeline_mode = #tpu.pipeline_mode<synchronous>, transform_indices = @transform_3, window_bounds = array<i64: 16, 576>}, {pipeline_mode = #tpu.pipeline_mode<synchronous>, transform_indices = @transform_4, window_bounds = array<i64: 1, 576>}, {transform_indices = @transform_5, window_bounds = array<i64: 1, 8, 16, 64>}]} {
    %c8_i32 = arith.constant 8 : i32
    %0 = arith.muli %arg1, %c8_i32 : i32
    %1 = tpu.assume_multiple %0, 8 : i32
    %c1_i32 = arith.constant 1 : i32
    %2 = arith.addi %1, %c1_i32 : i32
    %c0 = arith.constant 0 : index
    %3 = arith.index_cast %2 : i32 to index
    %c1 = arith.constant 1 : index
    %c0_0 = arith.constant 0 : index
    %4 = vector.load %arg2[%c0, %3, %c1, %c0_0] : memref<1x18x18x64xf32, #tpu.memory_space<vmem>>, vector<1x8x16x64xf32>
    %5 = vector.shape_cast %4 : vector<1x8x16x64xf32> to vector<8x16x64xf32>
    %6 = vector.shape_cast %5 : vector<8x16x64xf32> to vector<128x64xf32>
    %c0_1 = arith.constant 0 : index
    %c0_2 = arith.constant 0 : index
    %7 = vector.load %arg3[%c0_1, %c0_2] : memref<64x16xf32, #tpu.memory_space<vmem>>, vector<64x16xf32>
    %cst = arith.constant dense<0.000000e+00> : vector<128x16xf32>
    %8 = tpu.matmul %6, %7, %cst {dimension_numbers = #tpu.dot_dimension_numbers<[1], [0], [0], [1], [0, 0, 1, 1], [], []>} : vector<128x64xf32>, vector<64x16xf32>, vector<128x16xf32> -> vector<128x16xf32>
    %c0_3 = arith.constant 0 : index
    %c0_4 = arith.constant 0 : index
    %9 = vector.load %arg4[%c0_3, %c0_4] : memref<1x16xf32, #tpu.memory_space<vmem>>, vector<1x16xf32>
    %10 = vector.broadcast %9 : vector<1x16xf32> to vector<128x16xf32>
    %11 = arith.addf %8, %10 : vector<128x16xf32>
    %cst_5 = arith.constant 0.000000e+00 : f32
    %12 = vector.broadcast %cst_5 : f32 to vector<128x16xf32>
    %13 = arith.maximumf %11, %12 : vector<128x16xf32>
    %c0_6 = arith.constant 0 : index
    %c0_7 = arith.constant 0 : index
    %14 = vector.load %arg5[%c0_6, %c0_7] : memref<16x576xf32, #tpu.memory_space<vmem>>, vector<16x576xf32>
    %cst_8 = arith.constant dense<0.000000e+00> : vector<128x576xf32>
    %15 = tpu.matmul %13, %14, %cst_8 {dimension_numbers = #tpu.dot_dimension_numbers<[1], [0], [0], [1], [0, 0, 1, 1], [], []>} : vector<128x16xf32>, vector<16x576xf32>, vector<128x576xf32> -> vector<128x576xf32>
    %c0_9 = arith.constant 0 : index
    %c0_10 = arith.constant 0 : index
    %16 = vector.load %arg6[%c0_9, %c0_10] : memref<1x576xf32, #tpu.memory_space<vmem>>, vector<1x576xf32>
    %17 = vector.broadcast %16 : vector<1x576xf32> to vector<128x576xf32>
    %18 = arith.addf %15, %17 : vector<128x576xf32>
    %cst_11 = arith.constant 0.000000e+00 : f32
    %19 = vector.broadcast %cst_11 : f32 to vector<8x16x64xf32>
    %c0_12 = arith.constant 0 : index
    %c0_13 = arith.constant 0 : index
    %c0_14 = arith.constant 0 : index
    %20 = vector.load %arg8[%c0_12, %c0_13, %c0_14] : memref<8x16x64xf32, #tpu.memory_space<vmem>>, vector<8x16x64xf32>
    tpu.vector_store %arg8[%c0_12, %c0_13, %c0_14], %19 {strides = array<i32>} : memref<8x16x64xf32, #tpu.memory_space<vmem>>, vector<8x16x64xf32>,
    %21 = vector.extract_strided_slice %18 {offsets = [0, 0], sizes = [128, 64], strides = [1, 1]} : vector<128x576xf32> to vector<128x64xf32>
    %22 = vector.shape_cast %21 : vector<128x64xf32> to vector<8x16x64xf32>
    %c0_i32 = arith.constant 0 : i32
    %23 = arith.addi %c0_i32, %1 : i32
    %c0_i32_15 = arith.constant 0 : i32
    %24 = arith.addi %23, %c0_i32_15 : i32
    %c0_16 = arith.constant 0 : index
    %25 = arith.index_cast %24 : i32 to index
    %c0_17 = arith.constant 0 : index
    %c0_18 = arith.constant 0 : index
    %26 = vector.load %arg2[%c0_16, %25, %c0_17, %c0_18] : memref<1x18x18x64xf32, #tpu.memory_space<vmem>>, vector<1x8x16x64xf32>
    %27 = vector.shape_cast %26 : vector<1x8x16x64xf32> to vector<8x16x64xf32>
    %c0_19 = arith.constant 0 : index
    %c0_20 = arith.constant 0 : index
    %c0_21 = arith.constant 0 : index
    %28 = vector.load %arg8[%c0_19, %c0_20, %c0_21] : memref<8x16x64xf32, #tpu.memory_space<vmem>>, vector<8x16x64xf32>
    %29 = arith.mulf %22, %27 : vector<8x16x64xf32>
    %30 = arith.addf %28, %29 : vector<8x16x64xf32>
    %c0_22 = arith.constant 0 : index
    %c0_23 = arith.constant 0 : index
    %c0_24 = arith.constant 0 : index
    %31 = vector.load %arg8[%c0_22, %c0_23, %c0_24] : memref<8x16x64xf32, #tpu.memory_space<vmem>>, vector<8x16x64xf32>
    tpu.vector_store %arg8[%c0_22, %c0_23, %c0_24], %30 {strides = array<i32>} : memref<8x16x64xf32, #tpu.memory_space<vmem>>, vector<8x16x64xf32>,
    %32 = vector.extract_strided_slice %18 {offsets = [0, 64], sizes = [128, 64], strides = [1, 1]} : vector<128x576xf32> to vector<128x64xf32>
    %33 = vector.shape_cast %32 : vector<128x64xf32> to vector<8x16x64xf32>
    %c0_i32_25 = arith.constant 0 : i32
    %34 = arith.addi %c0_i32_25, %1 : i32
    %c0_i32_26 = arith.constant 0 : i32
    %35 = arith.addi %34, %c0_i32_26 : i32
    %c0_27 = arith.constant 0 : index
    %36 = arith.index_cast %35 : i32 to index
    %c1_28 = arith.constant 1 : index
    %c0_29 = arith.constant 0 : index
    %37 = vector.load %arg2[%c0_27, %36, %c1_28, %c0_29] : memref<1x18x18x64xf32, #tpu.memory_space<vmem>>, vector<1x8x16x64xf32>
    %38 = vector.shape_cast %37 : vector<1x8x16x64xf32> to vector<8x16x64xf32>
    %c0_30 = arith.constant 0 : index
    %c0_31 = arith.constant 0 : index
    %c0_32 = arith.constant 0 : index
    %39 = vector.load %arg8[%c0_30, %c0_31, %c0_32] : memref<8x16x64xf32, #tpu.memory_space<vmem>>, vector<8x16x64xf32>
    %40 = arith.mulf %33, %38 : vector<8x16x64xf32>
    %41 = arith.addf %39, %40 : vector<8x16x64xf32>
    %c0_33 = arith.constant 0 : index
    %c0_34 = arith.constant 0 : index
    %c0_35 = arith.constant 0 : index
    %42 = vector.load %arg8[%c0_33, %c0_34, %c0_35] : memref<8x16x64xf32, #tpu.memory_space<vmem>>, vector<8x16x64xf32>
    tpu.vector_store %arg8[%c0_33, %c0_34, %c0_35], %41 {strides = array<i32>} : memref<8x16x64xf32, #tpu.memory_space<vmem>>, vector<8x16x64xf32>,
    %43 = vector.extract_strided_slice %18 {offsets = [0, 128], sizes = [128, 64], strides = [1, 1]} : vector<128x576xf32> to vector<128x64xf32>
    %44 = vector.shape_cast %43 : vector<128x64xf32> to vector<8x16x64xf32>
    %c0_i32_36 = arith.constant 0 : i32
    %45 = arith.addi %c0_i32_36, %1 : i32
    %c0_i32_37 = arith.constant 0 : i32
    %46 = arith.addi %45, %c0_i32_37 : i32
    %c0_38 = arith.constant 0 : index
    %47 = arith.index_cast %46 : i32 to index
    %c2 = arith.constant 2 : index
    %c0_39 = arith.constant 0 : index
    %48 = vector.load %arg2[%c0_38, %47, %c2, %c0_39] : memref<1x18x18x64xf32, #tpu.memory_space<vmem>>, vector<1x8x16x64xf32>
    %49 = vector.shape_cast %48 : vector<1x8x16x64xf32> to vector<8x16x64xf32>
    %c0_40 = arith.constant 0 : index
    %c0_41 = arith.constant 0 : index
    %c0_42 = arith.constant 0 : index
    %50 = vector.load %arg8[%c0_40, %c0_41, %c0_42] : memref<8x16x64xf32, #tpu.memory_space<vmem>>, vector<8x16x64xf32>
    %51 = arith.mulf %44, %49 : vector<8x16x64xf32>
    %52 = arith.addf %50, %51 : vector<8x16x64xf32>
    %c0_43 = arith.constant 0 : index
    %c0_44 = arith.constant 0 : index
    %c0_45 = arith.constant 0 : index
    %53 = vector.load %arg8[%c0_43, %c0_44, %c0_45] : memref<8x16x64xf32, #tpu.memory_space<vmem>>, vector<8x16x64xf32>
    tpu.vector_store %arg8[%c0_43, %c0_44, %c0_45], %52 {strides = array<i32>} : memref<8x16x64xf32, #tpu.memory_space<vmem>>, vector<8x16x64xf32>,
    %54 = vector.extract_strided_slice %18 {offsets = [0, 192], sizes = [128, 64], strides = [1, 1]} : vector<128x576xf32> to vector<128x64xf32>
    %55 = vector.shape_cast %54 : vector<128x64xf32> to vector<8x16x64xf32>
    %c0_i32_46 = arith.constant 0 : i32
    %56 = arith.addi %c0_i32_46, %1 : i32
    %c1_i32_47 = arith.constant 1 : i32
    %57 = arith.addi %56, %c1_i32_47 : i32
    %c0_48 = arith.constant 0 : index
    %58 = arith.index_cast %57 : i32 to index
    %c0_49 = arith.constant 0 : index
    %c0_50 = arith.constant 0 : index
    %59 = vector.load %arg2[%c0_48, %58, %c0_49, %c0_50] : memref<1x18x18x64xf32, #tpu.memory_space<vmem>>, vector<1x8x16x64xf32>
    %60 = vector.shape_cast %59 : vector<1x8x16x64xf32> to vector<8x16x64xf32>
    %c0_51 = arith.constant 0 : index
    %c0_52 = arith.constant 0 : index
    %c0_53 = arith.constant 0 : index
    %61 = vector.load %arg8[%c0_51, %c0_52, %c0_53] : memref<8x16x64xf32, #tpu.memory_space<vmem>>, vector<8x16x64xf32>
    %62 = arith.mulf %55, %60 : vector<8x16x64xf32>
    %63 = arith.addf %61, %62 : vector<8x16x64xf32>
    %c0_54 = arith.constant 0 : index
    %c0_55 = arith.constant 0 : index
    %c0_56 = arith.constant 0 : index
    %64 = vector.load %arg8[%c0_54, %c0_55, %c0_56] : memref<8x16x64xf32, #tpu.memory_space<vmem>>, vector<8x16x64xf32>
    tpu.vector_store %arg8[%c0_54, %c0_55, %c0_56], %63 {strides = array<i32>} : memref<8x16x64xf32, #tpu.memory_space<vmem>>, vector<8x16x64xf32>,
    %65 = vector.extract_strided_slice %18 {offsets = [0, 256], sizes = [128, 64], strides = [1, 1]} : vector<128x576xf32> to vector<128x64xf32>
    %66 = vector.shape_cast %65 : vector<128x64xf32> to vector<8x16x64xf32>
    %c0_i32_57 = arith.constant 0 : i32
    %67 = arith.addi %c0_i32_57, %1 : i32
    %c1_i32_58 = arith.constant 1 : i32
    %68 = arith.addi %67, %c1_i32_58 : i32
    %c0_59 = arith.constant 0 : index
    %69 = arith.index_cast %68 : i32 to index
    %c1_60 = arith.constant 1 : index
    %c0_61 = arith.constant 0 : index
    %70 = vector.load %arg2[%c0_59, %69, %c1_60, %c0_61] : memref<1x18x18x64xf32, #tpu.memory_space<vmem>>, vector<1x8x16x64xf32>
    %71 = vector.shape_cast %70 : vector<1x8x16x64xf32> to vector<8x16x64xf32>
    %c0_62 = arith.constant 0 : index
    %c0_63 = arith.constant 0 : index
    %c0_64 = arith.constant 0 : index
    %72 = vector.load %arg8[%c0_62, %c0_63, %c0_64] : memref<8x16x64xf32, #tpu.memory_space<vmem>>, vector<8x16x64xf32>
    %73 = arith.mulf %66, %71 : vector<8x16x64xf32>
    %74 = arith.addf %72, %73 : vector<8x16x64xf32>
    %c0_65 = arith.constant 0 : index
    %c0_66 = arith.constant 0 : index
    %c0_67 = arith.constant 0 : index
    %75 = vector.load %arg8[%c0_65, %c0_66, %c0_67] : memref<8x16x64xf32, #tpu.memory_space<vmem>>, vector<8x16x64xf32>
    tpu.vector_store %arg8[%c0_65, %c0_66, %c0_67], %74 {strides = array<i32>} : memref<8x16x64xf32, #tpu.memory_space<vmem>>, vector<8x16x64xf32>,
    %76 = vector.extract_strided_slice %18 {offsets = [0, 320], sizes = [128, 64], strides = [1, 1]} : vector<128x576xf32> to vector<128x64xf32>
    %77 = vector.shape_cast %76 : vector<128x64xf32> to vector<8x16x64xf32>
    %c0_i32_68 = arith.constant 0 : i32
    %78 = arith.addi %c0_i32_68, %1 : i32
    %c1_i32_69 = arith.constant 1 : i32
    %79 = arith.addi %78, %c1_i32_69 : i32
    %c0_70 = arith.constant 0 : index
    %80 = arith.index_cast %79 : i32 to index
    %c2_71 = arith.constant 2 : index
    %c0_72 = arith.constant 0 : index
    %81 = vector.load %arg2[%c0_70, %80, %c2_71, %c0_72] : memref<1x18x18x64xf32, #tpu.memory_space<vmem>>, vector<1x8x16x64xf32>
    %82 = vector.shape_cast %81 : vector<1x8x16x64xf32> to vector<8x16x64xf32>
    %c0_73 = arith.constant 0 : index
    %c0_74 = arith.constant 0 : index
    %c0_75 = arith.constant 0 : index
    %83 = vector.load %arg8[%c0_73, %c0_74, %c0_75] : memref<8x16x64xf32, #tpu.memory_space<vmem>>, vector<8x16x64xf32>
    %84 = arith.mulf %77, %82 : vector<8x16x64xf32>
    %85 = arith.addf %83, %84 : vector<8x16x64xf32>
    %c0_76 = arith.constant 0 : index
    %c0_77 = arith.constant 0 : index
    %c0_78 = arith.constant 0 : index
    %86 = vector.load %arg8[%c0_76, %c0_77, %c0_78] : memref<8x16x64xf32, #tpu.memory_space<vmem>>, vector<8x16x64xf32>
    tpu.vector_store %arg8[%c0_76, %c0_77, %c0_78], %85 {strides = array<i32>} : memref<8x16x64xf32, #tpu.memory_space<vmem>>, vector<8x16x64xf32>,
    %87 = vector.extract_strided_slice %18 {offsets = [0, 384], sizes = [128, 64], strides = [1, 1]} : vector<128x576xf32> to vector<128x64xf32>
    %88 = vector.shape_cast %87 : vector<128x64xf32> to vector<8x16x64xf32>
    %c0_i32_79 = arith.constant 0 : i32
    %89 = arith.addi %c0_i32_79, %1 : i32
    %c2_i32 = arith.constant 2 : i32
    %90 = arith.addi %89, %c2_i32 : i32
    %c0_80 = arith.constant 0 : index
    %91 = arith.index_cast %90 : i32 to index
    %c0_81 = arith.constant 0 : index
    %c0_82 = arith.constant 0 : index
    %92 = vector.load %arg2[%c0_80, %91, %c0_81, %c0_82] : memref<1x18x18x64xf32, #tpu.memory_space<vmem>>, vector<1x8x16x64xf32>
    %93 = vector.shape_cast %92 : vector<1x8x16x64xf32> to vector<8x16x64xf32>
    %c0_83 = arith.constant 0 : index
    %c0_84 = arith.constant 0 : index
    %c0_85 = arith.constant 0 : index
    %94 = vector.load %arg8[%c0_83, %c0_84, %c0_85] : memref<8x16x64xf32, #tpu.memory_space<vmem>>, vector<8x16x64xf32>
    %95 = arith.mulf %88, %93 : vector<8x16x64xf32>
    %96 = arith.addf %94, %95 : vector<8x16x64xf32>
    %c0_86 = arith.constant 0 : index
    %c0_87 = arith.constant 0 : index
    %c0_88 = arith.constant 0 : index
    %97 = vector.load %arg8[%c0_86, %c0_87, %c0_88] : memref<8x16x64xf32, #tpu.memory_space<vmem>>, vector<8x16x64xf32>
    tpu.vector_store %arg8[%c0_86, %c0_87, %c0_88], %96 {strides = array<i32>} : memref<8x16x64xf32, #tpu.memory_space<vmem>>, vector<8x16x64xf32>,
    %98 = vector.extract_strided_slice %18 {offsets = [0, 448], sizes = [128, 64], strides = [1, 1]} : vector<128x576xf32> to vector<128x64xf32>
    %99 = vector.shape_cast %98 : vector<128x64xf32> to vector<8x16x64xf32>
    %c0_i32_89 = arith.constant 0 : i32
    %100 = arith.addi %c0_i32_89, %1 : i32
    %c2_i32_90 = arith.constant 2 : i32
    %101 = arith.addi %100, %c2_i32_90 : i32
    %c0_91 = arith.constant 0 : index
    %102 = arith.index_cast %101 : i32 to index
    %c1_92 = arith.constant 1 : index
    %c0_93 = arith.constant 0 : index
    %103 = vector.load %arg2[%c0_91, %102, %c1_92, %c0_93] : memref<1x18x18x64xf32, #tpu.memory_space<vmem>>, vector<1x8x16x64xf32>
    %104 = vector.shape_cast %103 : vector<1x8x16x64xf32> to vector<8x16x64xf32>
    %c0_94 = arith.constant 0 : index
    %c0_95 = arith.constant 0 : index
    %c0_96 = arith.constant 0 : index
    %105 = vector.load %arg8[%c0_94, %c0_95, %c0_96] : memref<8x16x64xf32, #tpu.memory_space<vmem>>, vector<8x16x64xf32>
    %106 = arith.mulf %99, %104 : vector<8x16x64xf32>
    %107 = arith.addf %105, %106 : vector<8x16x64xf32>
    %c0_97 = arith.constant 0 : index
    %c0_98 = arith.constant 0 : index
    %c0_99 = arith.constant 0 : index
    %108 = vector.load %arg8[%c0_97, %c0_98, %c0_99] : memref<8x16x64xf32, #tpu.memory_space<vmem>>, vector<8x16x64xf32>
    tpu.vector_store %arg8[%c0_97, %c0_98, %c0_99], %107 {strides = array<i32>} : memref<8x16x64xf32, #tpu.memory_space<vmem>>, vector<8x16x64xf32>,
    %109 = vector.extract_strided_slice %18 {offsets = [0, 512], sizes = [128, 64], strides = [1, 1]} : vector<128x576xf32> to vector<128x64xf32>
    %110 = vector.shape_cast %109 : vector<128x64xf32> to vector<8x16x64xf32>
    %c0_i32_100 = arith.constant 0 : i32
    %111 = arith.addi %c0_i32_100, %1 : i32
    %c2_i32_101 = arith.constant 2 : i32
    %112 = arith.addi %111, %c2_i32_101 : i32
    %c0_102 = arith.constant 0 : index
    %113 = arith.index_cast %112 : i32 to index
    %c2_103 = arith.constant 2 : index
    %c0_104 = arith.constant 0 : index
    %114 = vector.load %arg2[%c0_102, %113, %c2_103, %c0_104] : memref<1x18x18x64xf32, #tpu.memory_space<vmem>>, vector<1x8x16x64xf32>
    %115 = vector.shape_cast %114 : vector<1x8x16x64xf32> to vector<8x16x64xf32>
    %c0_105 = arith.constant 0 : index
    %c0_106 = arith.constant 0 : index
    %c0_107 = arith.constant 0 : index
    %116 = vector.load %arg8[%c0_105, %c0_106, %c0_107] : memref<8x16x64xf32, #tpu.memory_space<vmem>>, vector<8x16x64xf32>
    %117 = arith.mulf %110, %115 : vector<8x16x64xf32>
    %118 = arith.addf %116, %117 : vector<8x16x64xf32>
    %c0_108 = arith.constant 0 : index
    %c0_109 = arith.constant 0 : index
    %c0_110 = arith.constant 0 : index
    %119 = vector.load %arg8[%c0_108, %c0_109, %c0_110] : memref<8x16x64xf32, #tpu.memory_space<vmem>>, vector<8x16x64xf32>
    tpu.vector_store %arg8[%c0_108, %c0_109, %c0_110], %118 {strides = array<i32>} : memref<8x16x64xf32, #tpu.memory_space<vmem>>, vector<8x16x64xf32>,
    %c0_111 = arith.constant 0 : index
    %c0_112 = arith.constant 0 : index
    %c0_113 = arith.constant 0 : index
    %120 = vector.load %arg8[%c0_111, %c0_112, %c0_113] : memref<8x16x64xf32, #tpu.memory_space<vmem>>, vector<8x16x64xf32>
    %c0_114 = arith.constant 0 : index
    %c0_115 = arith.constant 0 : index
    %c0_116 = arith.constant 0 : index
    %c0_117 = arith.constant 0 : index
    %121 = vector.load %arg7[%c0_114, %c0_115, %c0_116, %c0_117] : memref<1x8x16x64xf32, #tpu.memory_space<vmem>>, vector<1x8x16x64xf32>
    %122 = vector.shape_cast %121 : vector<1x8x16x64xf32> to vector<8x16x64xf32>
    %123 = vector.shape_cast %120 : vector<8x16x64xf32> to vector<1x8x16x64xf32>
    tpu.vector_store %arg7[%c0_114, %c0_115, %c0_116, %c0_117], %123 {strides = array<i32>} : memref<1x8x16x64xf32, #tpu.memory_space<vmem>>, vector<1x8x16x64xf32>,
    return
  }
  func.func @transform_0(%arg0: i32, %arg1: i32) -> (i32, i32, i32, i32) {
    %c0_i32 = arith.constant 0 : i32
    %c0_i32_0 = arith.constant 0 : i32
    %c0_i32_1 = arith.constant 0 : i32
    %c0_i32_2 = arith.constant 0 : i32
    return %arg0, %c0_i32, %c0_i32_0, %c0_i32_1 : i32, i32, i32, i32
  }
  func.func @transform_1(%arg0: i32, %arg1: i32) -> (i32, i32) {
    %c0_i32 = arith.constant 0 : i32
    %c0_i32_0 = arith.constant 0 : i32
    %c0_i32_1 = arith.constant 0 : i32
    return %c0_i32, %c0_i32_0 : i32, i32
  }
  func.func @transform_2(%arg0: i32, %arg1: i32) -> (i32, i32) {
    %c0_i32 = arith.constant 0 : i32
    %c0_i32_0 = arith.constant 0 : i32
    %c0_i32_1 = arith.constant 0 : i32
    return %c0_i32, %c0_i32_0 : i32, i32
  }
  func.func @transform_3(%arg0: i32, %arg1: i32) -> (i32, i32) {
    %c0_i32 = arith.constant 0 : i32
    %c0_i32_0 = arith.constant 0 : i32
    %c0_i32_1 = arith.constant 0 : i32
    return %c0_i32, %c0_i32_0 : i32, i32
  }
  func.func @transform_4(%arg0: i32, %arg1: i32) -> (i32, i32) {
    %c0_i32 = arith.constant 0 : i32
    %c0_i32_0 = arith.constant 0 : i32
    %c0_i32_1 = arith.constant 0 : i32
    return %c0_i32, %c0_i32_0 : i32, i32
  }
  func.func @transform_5(%arg0: i32, %arg1: i32) -> (i32, i32, i32, i32) {
    %c0_i32 = arith.constant 0 : i32
    %c0_i32_0 = arith.constant 0 : i32
    %c0_i32_1 = arith.constant 0 : i32
    return %arg0, %arg1, %c0_i32, %c0_i32_0 : i32, i32, i32, i32
  }
}

</mosaic_0001>

<llo_original>
// kernel: tpu_custom_call.1
$region0: #{tpu_custom_call.1}
  #allocation0 [shape = 'u32[]', space=smem, size = 0x4, offset = 0x4, fixed_abs, tag = 'smem constant byte address 0x4 - core index']
  #allocation1 [shape = 'u32[144,128]{1,0:T(1,128)}', space=vmem, size = 0x12000, scoped, tag = 'internal scratch']
  #allocation2 [shape = 'f32[8,16,64]{2,1,0:T(8,128)}', space=vmem, size = 0x10000, scoped, tag = 'scratch operand']
  %s0 = inlined_call_operand.vmem [shape: f32[2,18,18,64], index: 0, kind: input, shape index: {}]
  %s1 = inlined_call_operand.vmem [shape: f32[64,16], index: 1, kind: input, shape index: {}]
  %s2 = inlined_call_operand.vmem [shape: f32[1,16], index: 2, kind: input, shape index: {}]
  %s3 = inlined_call_operand.vmem [shape: f32[16,576], index: 3, kind: input, shape index: {}]
  %s4 = inlined_call_operand.vmem [shape: f32[1,576], index: 4, kind: input, shape index: {}]
  %s5 = inlined_call_operand.hbm [shape: f32[2,16,16,64], index: 5, kind: output, shape index: {}]
  %s6 = sld [smem:[#allocation0]]
  $region53: #{tpu_custom_call.1} parent=0
    _
  %s8 = ssub.s32 1, %s6
  %s9 = scalar_select 0, %s8, %s6
  $region1: #{tpu_custom_call.1} parent=0
    #allocation3 [shape = 'u8[131072]{0}', space=vmem, size = 0x20000, scoped, tag = 'output window, operand 0']
    #allocation4 [shape = 's32[2]{0}', space=sflag, size = 0x8, scoped, tag = 'scoped memory for tpu_custom_call.1']
    %10 = vsyncpa [#allocation4], 0
    %s11 = scalar_lea.sflag [#allocation4], 1
    %12 = vsyncpa %s11, 0
    loop: start=0, step=1, limit=6
    $region2: #{tpu_custom_call.1} parent=1 // loop_pre_header
      _
    $region3: #{tpu_custom_call.1} parent=1 // loop_header
      %s14 = sphi 0, %s18
      %p15 = scmp.ge.s32.totalorder %s14, 6
      %s21 = sphi 0, %s33
      %s22 = sphi 0, %s29
      %s23 = sphi 0, %s21
      %s24 = sphi 0, %s22
      %s25 = sphi 0, %s23
      %s26 = sphi 0, %s24
      %s36 = sphi 0, %s38
      %s39 = sphi 0, %s36
      %s40 = sphi 0, %s39
      %s56 = sphi 0, %s40
      %s60 = sphi 0, %s60
      %s62 = sphi 0, %s60
      %s63 = sphi 0, %s62
      %s77 = sphi 0, %s63
      %s81 = sphi 0, %s81
      %s83 = sphi 0, %s81
      %s84 = sphi 0, %s83
      %s98 = sphi 0, %s84
      %s102 = sphi 0, %s102
      %s104 = sphi 0, %s102
      %s105 = sphi 0, %s104
      %s119 = sphi 0, %s105
      %s123 = sphi 0, %s123
      %s125 = sphi 0, %s123
      %s126 = sphi 0, %s125
      %s140 = sphi 0, %s126
      %s148 = sphi 0, %s150
      %s151 = sphi 0, %s148
      %s152 = sphi 0, %s151
      %s168 = sphi 0, %s152
    $region4: #{tpu_custom_call.1} parent=1 // loop_header_branch
      %17 = sbr.rel (%p15) target = $region8
    $region5: #{tpu_custom_call.1} parent=1 // loop_body
      %s19 = ssub.s32 %s14, 1
      %s20 = ssub.s32 %s14, 2
      %s27 = sadd.s32 1, %s22
      %p28 = scmp.ge.s32.totalorder %s27, 2
      %s29 = scalar_select %p28, 0, %s27
      %s30 = sadd.s32 1, %s21
      %s31 = scalar_select %p28, %s30, %s21
      %p32 = scmp.ge.s32.totalorder %s31, 2
      %s33 = scalar_select %p32, 0, %s31
      %s34 = ssub.s32 %s21, %s33
      %p35 = scmp.eq.s32.totalorder %s34, 0
      %s37 = sadd.s32 %s36, 1
      %s38 = scalar_select %p35, %s36, %s37
      %p41 = pneg %p35
      %p42 = scmp.eq.s32.totalorder %s14, 3
      %p43 = por %p41, %p42
      %p44 = scmp.ne.s32.totalorder %s36, %s39
      %p45 = scmp.eq.s32.totalorder %s14, 0
      %p46 = por %p44, %p45
      %p47 = scmp.ne.s32.totalorder %s36, %s39
      %p48 = scmp.eq.s32.totalorder %s19, 3
      %p49 = por %p47, %p48
      %p50 = scmp.ne.s32.totalorder %s39, %s40
      %p51 = scmp.eq.s32.totalorder %s19, 0
      %p52 = por %p50, %p51
      %p53 = scmp.ne.s32.totalorder %s39, %s40
      %p54 = scmp.eq.s32.totalorder %s20, 3
      %p55 = por %p53, %p54
      %p57 = scmp.ne.s32.totalorder %s40, %s56
      %p58 = scmp.eq.s32.totalorder %s20, 0
      %p59 = por %p57, %p58
      %s61 = sadd.s32 %s60, 1
      %p64 = scmp.eq.s32.totalorder %s14, 3
      %p65 = scmp.ne.s32.totalorder %s60, %s62
      %p66 = scmp.eq.s32.totalorder %s14, 0
      %p67 = por %p65, %p66
      %p68 = scmp.ne.s32.totalorder %s60, %s62
      %p69 = scmp.eq.s32.totalorder %s19, 3
      %p70 = por %p68, %p69
      %p71 = scmp.ne.s32.totalorder %s62, %s63
      %p72 = scmp.eq.s32.totalorder %s19, 0
      %p73 = por %p71, %p72
      %p74 = scmp.ne.s32.totalorder %s62, %s63
      %p75 = scmp.eq.s32.totalorder %s20, 3
      %p76 = por %p74, %p75
      %p78 = scmp.ne.s32.totalorder %s63, %s77
      %p79 = scmp.eq.s32.totalorder %s20, 0
      %p80 = por %p78, %p79
      %s82 = sadd.s32 %s81, 1
      %p85 = scmp.eq.s32.totalorder %s14, 3
      %p86 = scmp.ne.s32.totalorder %s81, %s83
      %p87 = scmp.eq.s32.totalorder %s14, 0
      %p88 = por %p86, %p87
      %p89 = scmp.ne.s32.totalorder %s81, %s83
      %p90 = scmp.eq.s32.totalorder %s19, 3
      %p91 = por %p89, %p90
      %p92 = scmp.ne.s32.totalorder %s83, %s84
      %p93 = scmp.eq.s32.totalorder %s19, 0
      %p94 = por %p92, %p93
      %p95 = scmp.ne.s32.totalorder %s83, %s84
      %p96 = scmp.eq.s32.totalorder %s20, 3
      %p97 = por %p95, %p96
      %p99 = scmp.ne.s32.totalorder %s84, %s98
      %p100 = scmp.eq.s32.totalorder %s20, 0
      %p101 = por %p99, %p100
      %s103 = sadd.s32 %s102, 1
      %p106 = scmp.eq.s32.totalorder %s14, 3
      %p107 = scmp.ne.s32.totalorder %s102, %s104
      %p108 = scmp.eq.s32.totalorder %s14, 0
      %p109 = por %p107, %p108
      %p110 = scmp.ne.s32.totalorder %s102, %s104
      %p111 = scmp.eq.s32.totalorder %s19, 3
      %p112 = por %p110, %p111
      %p113 = scmp.ne.s32.totalorder %s104, %s105
      %p114 = scmp.eq.s32.totalorder %s19, 0
      %p115 = por %p113, %p114
      %p116 = scmp.ne.s32.totalorder %s104, %s105
      %p117 = scmp.eq.s32.totalorder %s20, 3
      %p118 = por %p116, %p117
      %p120 = scmp.ne.s32.totalorder %s105, %s119
      %p121 = scmp.eq.s32.totalorder %s20, 0
      %p122 = por %p120, %p121
      %s124 = sadd.s32 %s123, 1
      %p127 = scmp.eq.s32.totalorder %s14, 3
      %p128 = scmp.ne.s32.totalorder %s123, %s125
      %p129 = scmp.eq.s32.totalorder %s14, 0
      %p130 = por %p128, %p129
      %p131 = scmp.ne.s32.totalorder %s123, %s125
      %p132 = scmp.eq.s32.totalorder %s19, 3
      %p133 = por %p131, %p132
      %p134 = scmp.ne.s32.totalorder %s125, %s126
      %p135 = scmp.eq.s32.totalorder %s19, 0
      %p136 = por %p134, %p135
      %p137 = scmp.ne.s32.totalorder %s125, %s126
      %p138 = scmp.eq.s32.totalorder %s20, 3
      %p139 = por %p137, %p138
      %p141 = scmp.ne.s32.totalorder %s126, %s140
      %p142 = scmp.eq.s32.totalorder %s20, 0
      %p143 = por %p141, %p142
      %s144 = ssub.s32 %s21, %s33
      %s145 = ssub.s32 %s22, %s29
      %s146 = sor.u32 %s144, %s145
      %p147 = scmp.eq.s32.totalorder %s146, 0
      %s149 = sadd.s32 %s148, 1
      %s150 = scalar_select %p147, %s148, %s149
      %p153 = pneg %p147
      %p154 = scmp.eq.s32.totalorder %s14, 3
      %p155 = por %p153, %p154
      %p156 = scmp.ne.s32.totalorder %s148, %s151
      %p157 = scmp.eq.s32.totalorder %s14, 0
      %p158 = por %p156, %p157
      %p159 = scmp.ne.s32.totalorder %s148, %s151
      %p160 = scmp.eq.s32.totalorder %s19, 3
      %p161 = por %p159, %p160
      %p162 = scmp.ne.s32.totalorder %s151, %s152
      %p163 = scmp.eq.s32.totalorder %s19, 0
      %p164 = por %p162, %p163
      %p165 = scmp.ne.s32.totalorder %s151, %s152
      %p166 = scmp.eq.s32.totalorder %s20, 3
      %p167 = por %p165, %p166
      %p169 = scmp.ne.s32.totalorder %s152, %s168
      %p170 = scmp.eq.s32.totalorder %s20, 0
      %p171 = por %p169, %p170
      %p172 = scmp.le.s32.totalorder 1, %s14
      %p173 = scmp.lt.s32.totalorder %s14, 5
      %p174 = pnand %p172, %p173
      %p175 = pneg %p174
      // Predicated region
      $region9: #{tpu_custom_call.1} parent=5 // pred_check
        _
      $region10: #{tpu_custom_call.1} parent=5 // pred_check_branch
        %177 = sbr.rel (%p174) target = $region12
      $region11: #{tpu_custom_call.1} parent=5 // pred_region
        %s178 = ssub.s32 %s14, 1
        // Predicated region
        $region13: #{tpu_custom_call.1} parent=11 // pred_check
          %p179 = pneg %p73
        $region14: #{tpu_custom_call.1} parent=11 // pred_check_branch
          %181 = sbr.rel (%p179) target = $region16
        $region15: #{tpu_custom_call.1} parent=11 // pred_region
          _
        $region16: #{tpu_custom_call.1} parent=11 // pred_fallthru
          _
        // Predicated region
        $region17: #{tpu_custom_call.1} parent=11 // pred_check
          %p182 = pneg %p94
        $region18: #{tpu_custom_call.1} parent=11 // pred_check_branch
          %184 = sbr.rel (%p182) target = $region20
        $region19: #{tpu_custom_call.1} parent=11 // pred_region
          _
        $region20: #{tpu_custom_call.1} parent=11 // pred_fallthru
          _
        // Predicated region
        $region21: #{tpu_custom_call.1} parent=11 // pred_check
          %p185 = pneg %p115
        $region22: #{tpu_custom_call.1} parent=11 // pred_check_branch
          %187 = sbr.rel (%p185) target = $region24
        $region23: #{tpu_custom_call.1} parent=11 // pred_region
          _
        $region24: #{tpu_custom_call.1} parent=11 // pred_fallthru
          _
        // Predicated region
        $region25: #{tpu_custom_call.1} parent=11 // pred_check
          %p188 = pneg %p136
        $region26: #{tpu_custom_call.1} parent=11 // pred_check_branch
          %190 = sbr.rel (%p188) target = $region28
        $region27: #{tpu_custom_call.1} parent=11 // pred_region
          _
        $region28: #{tpu_custom_call.1} parent=11 // pred_fallthru
          _
      $region12: #{tpu_custom_call.1} parent=5 // pred_fallthru
        _
      %p191 = scmp.lt.s32.totalorder %s14, 4
      // Predicated region
      $region29: #{tpu_custom_call.1} parent=5 // pred_check
        %p192 = pneg %p191
      $region30: #{tpu_custom_call.1} parent=5 // pred_check_branch
        %194 = sbr.rel (%p192) target = $region32
      $region31: #{tpu_custom_call.1} parent=5 // pred_region
        // Predicated region
        $region33: #{tpu_custom_call.1} parent=31 // pred_check
          %p195 = pneg %p46
        $region34: #{tpu_custom_call.1} parent=31 // pred_check_branch
          %197 = sbr.rel (%p195) target = $region36
        $region35: #{tpu_custom_call.1} parent=31 // pred_region
          %p198 = scmp.lt.s32.totalorder %s21, 1
          %s199 = scalar_select %p198, %s21, 1
          %s200 = smul.addr %s199, 54
          %s201 = smul.addr %s200, 8
          %s202 = scalar_lea.vmem %s0, %s201
        $region36: #{tpu_custom_call.1} parent=31 // pred_fallthru
          _
      $region32: #{tpu_custom_call.1} parent=5 // pred_fallthru
        _
      %p203 = scmp.le.s32.totalorder 1, %s14
      %p204 = scmp.lt.s32.totalorder %s14, 5
      %p205 = pnand %p203, %p204
      %p206 = pneg %p205
      // Predicated region
      $region37: #{tpu_custom_call.1} parent=5 // pred_check
        _
      $region38: #{tpu_custom_call.1} parent=5 // pred_check_branch
        %208 = sbr.rel (%p205) target = $region40
      $region39: #{tpu_custom_call.1} parent=5 // pred_region
        %s209 = ssub.s32 %s14, 1
        %p210 = scmp.lt.s32.totalorder %s23, 1
        %s211 = scalar_select %p210, %s23, 1
        %s212 = smul.addr %s211, 54
        %s213 = smul.addr %s212, 8
        %s214 = scalar_lea.vmem %s0, %s213
        %p215 = pneg %p52
        %p216 = pneg %p49
        %p217 = pneg %p73
        %p218 = pneg %p70
        %p219 = pneg %p94
        %p220 = pneg %p91
        %p221 = pneg %p115
        %p222 = pneg %p112
        %p223 = pneg %p136
        %p224 = pneg %p133
        %p225 = pneg %p164
        %p226 = pneg %p161
        %s227 = sand.u32 %s151, 1
        %s228 = scalar_lea.sflag [#allocation4], %s227
        %s229 = sand.u32 %s151, 1
        %s230 = smul.addr %s229, 128
        %s231 = scalar_lea.vmem [#allocation3], %s230
        %p232 = scmp.lt.s32.totalorder %s23, 1
        %s233 = scalar_select %p232, %s23, 1
        %s234 = smul.addr %s233, 54
        %s235 = smul.addr %s234, 8
        %s236 = scalar_lea.vmem %s0, %s235
        %s237 = smul.u32 8, %s24
        %s238 = smul.u32 %s24, 8
        %s239 = sadd.s32 %s238, 1
        %s240 = smul.u32 %s239, 24
        %s241 = scalar_lea.vmem %s236, %s240
        %v242 = vld [vmem:[%s241 + $0x1] sm:$0xff]
        %v243 = vld [vmem:[%s241 + $0x9] sm:$0xff]
        %v244 = vld [vmem:[%s241 + $0x19] sm:$0xff]
        %v245 = vld [vmem:[%s241 + $0x21] sm:$0xff]
        %v246 = vld [vmem:[%s241 + $0x31] sm:$0xff]
        %v247 = vld [vmem:[%s241 + $0x39] sm:$0xff]
        %v248 = vld [vmem:[%s241 + $0x49] sm:$0xff]
        %v249 = vld [vmem:[%s241 + $0x51] sm:$0xff]
        %v250 = vld [vmem:[%s241 + $0x61] sm:$0xff]
        %v251 = vld [vmem:[%s241 + $0x69] sm:$0xff]
        %v252 = vld [vmem:[%s241 + $0x79] sm:$0xff]
        %v253 = vld [vmem:[%s241 + $0x81] sm:$0xff]
        %v254 = vld [vmem:[%s241 + $0x91] sm:$0xff]
        %v255 = vld [vmem:[%s241 + $0x99] sm:$0xff]
        %v256 = vld [vmem:[%s241 + $0xa9] sm:$0xff]
        %v257 = vld [vmem:[%s241 + $0xb1] sm:$0xff]
        %v258 = vld [vmem:[%s1] sm:$0xff]
        %v259 = vld [vmem:[%s1 + $0x8] sm:$0xff]
        %v260 = vld [vmem:[%s1 + $0x10] sm:$0xff]
        %v261 = vld [vmem:[%s1 + $0x18] sm:$0xff]
        %v262 = vld [vmem:[%s1 + $0x20] sm:$0xff]
        %v263 = vld [vmem:[%s1 + $0x28] sm:$0xff]
        %v264 = vld [vmem:[%s1 + $0x30] sm:$0xff]
        %v265 = vld [vmem:[%s1 + $0x38] sm:$0xff]
        %v266 = vld [vmem:[%s2] sm:$0x1]
        %v268 = vlaneseq
        %v269 = vshrl.u32 %v268, 7
        %v270 = vsub.s32 0, %v269
        %v271 = vrot.slane %v266, %v270
        %vm273 = vcmask 523264
        %v275 = vsel %vm273, %v242, 0
        %v278 = vsel %vm273, %v243, 0
        %v281 = vsel %vm273, %v244, 0
        %v284 = vsel %vm273, %v245, 0
        %v287 = vsel %vm273, %v246, 0
        %v290 = vsel %vm273, %v247, 0
        %v293 = vsel %vm273, %v248, 0
        %v296 = vsel %vm273, %v249, 0
        %v299 = vsel %vm273, %v250, 0
        %v302 = vsel %vm273, %v251, 0
        %v305 = vsel %vm273, %v252, 0
        %v308 = vsel %vm273, %v253, 0
        %v311 = vsel %vm273, %v254, 0
        %v314 = vsel %vm273, %v255, 0
        %v317 = vsel %vm273, %v256, 0
        %v320 = vsel %vm273, %v257, 0
        %322 = vmatprep.subr.mxu0 0.0
        %323 = vmatpush1.msra.mxu0 %v258
        %324 = vmatprep.subr.mxu0 0.0
        %325 = vmatpush1.msra.mxu0 %v259
        %326 = vmatprep.subr.mxu0 0.0
        %327 = vmatpush1.msra.mxu0 %v260
        %328 = vmatprep.subr.mxu0 0.0
        %329 = vmatpush1.msra.mxu0 %v261
        %330 = vmatprep.subr.mxu0 0.0
        %331 = vmatpush1.msra.mxu0 %v262
        %332 = vmatprep.subr.mxu0 0.0
        %333 = vmatpush1.msra.mxu0 %v263
        %334 = vmatprep.subr.mxu0 0.0
        %335 = vmatpush1.msra.mxu0 %v264
        %336 = vmatprep.subr.mxu0 0.0
        %337 = vmatpush1.msra.mxu0 %v265
        %338 = vmatprep.subr.mxu0 0.0
        %339 = vmatpush1.msra.mxu0 0.0
        %340 = vmatprep.subr.mxu0 0.0
        %341 = vmatpush1.msra.mxu0 0.0
        %342 = vmatprep.subr.mxu0 0.0
        %343 = vmatpush1.msra.mxu0 0.0
        %344 = vmatprep.subr.mxu0 0.0
        %345 = vmatpush1.msra.mxu0 0.0
        %346 = vmatprep.subr.mxu0 0.0
        %347 = vmatpush1.msra.mxu0 0.0
        %348 = vmatprep.subr.mxu0 0.0
        %349 = vmatpush1.msra.mxu0 0.0
        %350 = vmatprep.subr.mxu0 0.0
        %351 = vmatpush1.msra.mxu0 0.0
        %352 = vmatprep.subr.mxu0 0.0
        %353 = vmatpush1.msra.mxu0 0.0
        %354 = vmatprep.subr.mxu0 0.0
        %355 = vmatpush1.msra.mxu0 0.0
        %356 = vmatprep.subr.mxu0 0.0
        %357 = vmatpush1.msra.mxu0 0.0
        %358 = vmatprep.subr.mxu0 0.0
        %359 = vmatpush1.msra.mxu0 0.0
        %360 = vmatprep.subr.mxu0 0.0
        %361 = vmatpush1.msra.mxu0 0.0
        %362 = vmatprep.subr.mxu0 0.0
        %363 = vmatpush1.msra.mxu0 0.0
        %364 = vmatprep.subr.mxu0 0.0
        %365 = vmatpush1.msra.mxu0 0.0
        %366 = vmatprep.subr.mxu0 0.0
        %367 = vmatpush1.msra.mxu0 0.0
        %368 = vmatprep.subr.mxu0 0.0
        %369 = vmatpush1.msra.mxu0 0.0
        %370 = vmatprep.subr.mxu0 0.0
        %371 = vmatpush1.msra.mxu0 0.0
        %372 = vmatprep.subr.mxu0 0.0
        %373 = vmatpush1.msra.mxu0 0.0
        %374 = vmatprep.subr.mxu0 0.0
        %375 = vmatpush1.msra.mxu0 0.0
        %376 = vmatprep.subr.mxu0 0.0
        %377 = vmatpush1.msra.mxu0 0.0
        %378 = vmatprep.subr.mxu0 0.0
        %379 = vmatpush1.msra.mxu0 0.0
        %380 = vmatprep.subr.mxu0 0.0
        %381 = vmatpush1.msra.mxu0 0.0
        %382 = vmatprep.subr.mxu0 0.0
        %383 = vmatpush1.msra.mxu0 0.0
        %384 = vmatprep.subr.mxu0 0.0
        %385 = vmatpush1.msra.mxu0 0.0
        %386 = vmatprep.mubr.f32.mxu0 0.0
        %387 = vmatmul.mubr.f32.gmra.mrb[0].mxu0 %v275
        %v388 = vpop.f32.mrb[0].mxu0
        %v389 = vadd.f32 %v271, %v388
        %v390 = vpop.f32.mrb[0].mxu0
        %391 = vmatprep.mubr.f32.mxu0 0.0
        %392 = vmatmul.mubr.f32.gmra.mrb[0].mxu0 %v278
        %v393 = vpop.f32.mrb[0].mxu0
        %v394 = vadd.f32 %v271, %v393
        %v395 = vpop.f32.mrb[0].mxu0
        %396 = vmatprep.mubr.f32.mxu0 0.0
        %397 = vmatmul.mubr.f32.gmra.mrb[0].mxu0 %v281
        %v398 = vpop.f32.mrb[0].mxu0
        %v399 = vadd.f32 %v271, %v398
        %v400 = vpop.f32.mrb[0].mxu0
        %401 = vmatprep.mubr.f32.mxu0 0.0
        %402 = vmatmul.mubr.f32.gmra.mrb[0].mxu0 %v284
        %v403 = vpop.f32.mrb[0].mxu0
        %v404 = vadd.f32 %v271, %v403
        %v405 = vpop.f32.mrb[0].mxu0
        %406 = vmatprep.mubr.f32.mxu0 0.0
        %407 = vmatmul.mubr.f32.gmra.mrb[0].mxu0 %v287
        %v408 = vpop.f32.mrb[0].mxu0
        %v409 = vadd.f32 %v271, %v408
        %v410 = vpop.f32.mrb[0].mxu0
        %411 = vmatprep.mubr.f32.mxu0 0.0
        %412 = vmatmul.mubr.f32.gmra.mrb[0].mxu0 %v290
        %v413 = vpop.f32.mrb[0].mxu0
        %v414 = vadd.f32 %v271, %v413
        %v415 = vpop.f32.mrb[0].mxu0
        %416 = vmatprep.mubr.f32.mxu0 0.0
        %417 = vmatmul.mubr.f32.gmra.mrb[0].mxu0 %v293
        %v418 = vpop.f32.mrb[0].mxu0
        %v419 = vadd.f32 %v271, %v418
        %v420 = vpop.f32.mrb[0].mxu0
        %421 = vmatprep.mubr.f32.mxu0 0.0
        %422 = vmatmul.mubr.f32.gmra.mrb[0].mxu0 %v296
        %v423 = vpop.f32.mrb[0].mxu0
        %v424 = vadd.f32 %v271, %v423
        %v425 = vpop.f32.mrb[0].mxu0
        %426 = vmatprep.mubr.f32.mxu0 0.0
        %427 = vmatmul.mubr.f32.gmra.mrb[0].mxu0 %v299
        %v428 = vpop.f32.mrb[0].mxu0
        %v429 = vadd.f32 %v271, %v428
        %v430 = vpop.f32.mrb[0].mxu0
        %431 = vmatprep.mubr.f32.mxu0 0.0
        %432 = vmatmul.mubr.f32.gmra.mrb[0].mxu0 %v302
        %v433 = vpop.f32.mrb[0].mxu0
        %v434 = vadd.f32 %v271, %v433
        %v435 = vpop.f32.mrb[0].mxu0
        %436 = vmatprep.mubr.f32.mxu0 0.0
        %437 = vmatmul.mubr.f32.gmra.mrb[0].mxu0 %v305
        %v438 = vpop.f32.mrb[0].mxu0
        %v439 = vadd.f32 %v271, %v438
        %v440 = vpop.f32.mrb[0].mxu0
        %441 = vmatprep.mubr.f32.mxu0 0.0
        %442 = vmatmul.mubr.f32.gmra.mrb[0].mxu0 %v308
        %v443 = vpop.f32.mrb[0].mxu0
        %v444 = vadd.f32 %v271, %v443
        %v445 = vpop.f32.mrb[0].mxu0
        %446 = vmatprep.mubr.f32.mxu0 0.0
        %447 = vmatmul.mubr.f32.gmra.mrb[0].mxu0 %v311
        %v448 = vpop.f32.mrb[0].mxu0
        %v449 = vadd.f32 %v271, %v448
        %v450 = vpop.f32.mrb[0].mxu0
        %451 = vmatprep.mubr.f32.mxu0 0.0
        %452 = vmatmul.mubr.f32.gmra.mrb[0].mxu0 %v314
        %v453 = vpop.f32.mrb[0].mxu0
        %v454 = vadd.f32 %v271, %v453
        %v455 = vpop.f32.mrb[0].mxu0
        %456 = vmatprep.mubr.f32.mxu0 0.0
        %457 = vmatmul.mubr.f32.gmra.mrb[0].mxu0 %v317
        %v458 = vpop.f32.mrb[0].mxu0
        %v459 = vadd.f32 %v271, %v458
        %v460 = vpop.f32.mrb[0].mxu0
        %461 = vmatprep.mubr.f32.mxu0 0.0
        %462 = vmatmul.mubr.f32.gmra.mrb[0].mxu0 %v320
        %v463 = vpop.f32.mrb[0].mxu0
        %v464 = vadd.f32 %v271, %v463
        %v465 = vpop.f32.mrb[0].mxu0
        %466 = vdwg.mxu0
        %v467 = vmax.f32 %v389, 0.0
        %v468 = vmax.f32 %v394, 0.0
        %v469 = vmax.f32 %v399, 0.0
        %v470 = vmax.f32 %v404, 0.0
        %v471 = vmax.f32 %v409, 0.0
        %v472 = vmax.f32 %v414, 0.0
        %v473 = vmax.f32 %v419, 0.0
        %v474 = vmax.f32 %v424, 0.0
        %v475 = vmax.f32 %v429, 0.0
        %v476 = vmax.f32 %v434, 0.0
        %v477 = vmax.f32 %v439, 0.0
        %v478 = vmax.f32 %v444, 0.0
        %v479 = vmax.f32 %v449, 0.0
        %v480 = vmax.f32 %v454, 0.0
        %v481 = vmax.f32 %v459, 0.0
        %v482 = vmax.f32 %v464, 0.0
        %v483 = vld [vmem:[%s3] sm:$0xff]
        %v484 = vld [vmem:[%s3 + $0x8] sm:$0xff]
        %v485 = vld [vmem:[%s3 + $0x10] sm:$0xff]
        %v486 = vld [vmem:[%s3 + $0x18] sm:$0xff]
        %v487 = vld [vmem:[%s3 + $0x20] sm:$0xff]
        %v488 = vld [vmem:[%s3 + $0x28] sm:$0xff]
        %v489 = vld [vmem:[%s3 + $0x30] sm:$0xff]
        %v490 = vld [vmem:[%s3 + $0x38] sm:$0xff]
        %v491 = vld [vmem:[%s3 + $0x40] sm:$0xff]
        %v492 = vld [vmem:[%s3 + $0x48] sm:$0xff]
        %v493 = vld [vmem:[%s4] sm:$0x1f]
        %v495 = vlaneseq
        %v496 = vshrl.u32 %v495, 7
        %v497 = vsub.s32 0, %v496
        %v498 = vrot.slane %v493, %v497
        %v499 = vlaneseq
        %v500 = vshrl.u32 %v499, 7
        %v501 = vsub.s32 1, %v500
        %v502 = vrot.slane %v493, %v501
        %v503 = vlaneseq
        %v504 = vshrl.u32 %v503, 7
        %v505 = vsub.s32 2, %v504
        %v506 = vrot.slane %v493, %v505
        %v507 = vlaneseq
        %v508 = vshrl.u32 %v507, 7
        %v509 = vsub.s32 3, %v508
        %v510 = vrot.slane %v493, %v509
        %v511 = vlaneseq
        %v512 = vshrl.u32 %v511, 7
        %v513 = vsub.s32 4, %v512
        %v514 = vrot.slane %v493, %v513
        %vm520 = vcmask 130048
        %v522 = vsel %vm520, %v467, 0
        %v525 = vsel %vm520, %v468, 0
        %v528 = vsel %vm520, %v469, 0
        %v531 = vsel %vm520, %v470, 0
        %v534 = vsel %vm520, %v471, 0
        %v537 = vsel %vm520, %v472, 0
        %v540 = vsel %vm520, %v473, 0
        %v543 = vsel %vm520, %v474, 0
        %v546 = vsel %vm520, %v475, 0
        %v549 = vsel %vm520, %v476, 0
        %v552 = vsel %vm520, %v477, 0
        %v555 = vsel %vm520, %v478, 0
        %v558 = vsel %vm520, %v479, 0
        %v561 = vsel %vm520, %v480, 0
        %v564 = vsel %vm520, %v481, 0
        %v567 = vsel %vm520, %v482, 0
        %569 = vmatprep.subr.mxu0 %v484
        %570 = vmatpush1.msra.mxu0 %v483
        %571 = vmatprep.subr.mxu0 %v489
        %572 = vmatpush1.msra.mxu0 %v488
        %573 = vmatprep.subr.mxu0 0.0
        %574 = vmatpush1.msra.mxu0 0.0
        %575 = vmatprep.subr.mxu0 0.0
        %576 = vmatpush1.msra.mxu0 0.0
        %577 = vmatprep.subr.mxu0 0.0
        %578 = vmatpush1.msra.mxu0 0.0
        %579 = vmatprep.subr.mxu0 0.0
        %580 = vmatpush1.msra.mxu0 0.0
        %581 = vmatprep.subr.mxu0 0.0
        %582 = vmatpush1.msra.mxu0 0.0
        %583 = vmatprep.subr.mxu0 0.0
        %584 = vmatpush1.msra.mxu0 0.0
        %585 = vmatprep.subr.mxu0 0.0
        %586 = vmatpush1.msra.mxu0 0.0
        %587 = vmatprep.subr.mxu0 0.0
        %588 = vmatpush1.msra.mxu0 0.0
        %589 = vmatprep.subr.mxu0 0.0
        %590 = vmatpush1.msra.mxu0 0.0
        %591 = vmatprep.subr.mxu0 0.0
        %592 = vmatpush1.msra.mxu0 0.0
        %593 = vmatprep.subr.mxu0 0.0
        %594 = vmatpush1.msra.mxu0 0.0
        %595 = vmatprep.subr.mxu0 0.0
        %596 = vmatpush1.msra.mxu0 0.0
        %597 = vmatprep.subr.mxu0 0.0
        %598 = vmatpush1.msra.mxu0 0.0
        %599 = vmatprep.subr.mxu0 0.0
        %600 = vmatpush1.msra.mxu0 0.0
        %601 = vmatprep.subr.mxu0 0.0
        %602 = vmatpush1.msra.mxu0 0.0
        %603 = vmatprep.subr.mxu0 0.0
        %604 = vmatpush1.msra.mxu0 0.0
        %605 = vmatprep.subr.mxu0 0.0
        %606 = vmatpush1.msra.mxu0 0.0
        %607 = vmatprep.subr.mxu0 0.0
        %608 = vmatpush1.msra.mxu0 0.0
        %609 = vmatprep.subr.mxu0 0.0
        %610 = vmatpush1.msra.mxu0 0.0
        %611 = vmatprep.subr.mxu0 0.0
        %612 = vmatpush1.msra.mxu0 0.0
        %613 = vmatprep.subr.mxu0 0.0
        %614 = vmatpush1.msra.mxu0 0.0
        %615 = vmatprep.subr.mxu0 0.0
        %616 = vmatpush1.msra.mxu0 0.0
        %617 = vmatprep.subr.mxu0 0.0
        %618 = vmatpush1.msra.mxu0 0.0
        %619 = vmatprep.subr.mxu0 0.0
        %620 = vmatpush1.msra.mxu0 0.0
        %621 = vmatprep.subr.mxu0 0.0
        %622 = vmatpush1.msra.mxu0 0.0
        %623 = vmatprep.subr.mxu0 0.0
        %624 = vmatpush1.msra.mxu0 0.0
        %625 = vmatprep.subr.mxu0 0.0
        %626 = vmatpush1.msra.mxu0 0.0
        %627 = vmatprep.subr.mxu0 0.0
        %628 = vmatpush1.msra.mxu0 0.0
        %629 = vmatprep.subr.mxu0 0.0
        %630 = vmatpush1.msra.mxu0 0.0
        %631 = vmatprep.subr.mxu0 0.0
        %632 = vmatpush1.msra.mxu0 0.0
        %633 = vmatprep.mubr.f32.mxu0 0.0
        %634 = vmatmul.mubr.f32.gmra.mrb[0].mxu0 %v522
        %v635 = vpop.f32.mrb[0].mxu0
        %v636 = vadd.f32 %v498, %v635
        %v637 = vpop.f32.mrb[0].mxu0
        %v638 = vadd.f32 %v502, %v637
        %639 = vmatprep.mubr.f32.mxu0 0.0
        %640 = vmatmul.mubr.f32.gmra.mrb[0].mxu0 %v525
        %v641 = vpop.f32.mrb[0].mxu0
        %v642 = vadd.f32 %v498, %v641
        %v643 = vpop.f32.mrb[0].mxu0
        %v644 = vadd.f32 %v502, %v643
        %645 = vmatprep.mubr.f32.mxu0 0.0
        %646 = vmatmul.mubr.f32.gmra.mrb[0].mxu0 %v528
        %v647 = vpop.f32.mrb[0].mxu0
        %v648 = vadd.f32 %v498, %v647
        %v649 = vpop.f32.mrb[0].mxu0
        %v650 = vadd.f32 %v502, %v649
        %651 = vmatprep.mubr.f32.mxu0 0.0
        %652 = vmatmul.mubr.f32.gmra.mrb[0].mxu0 %v531
        %v653 = vpop.f32.mrb[0].mxu0
        %v654 = vadd.f32 %v498, %v653
        %v655 = vpop.f32.mrb[0].mxu0
        %v656 = vadd.f32 %v502, %v655
        %657 = vmatprep.mubr.f32.mxu0 0.0
        %658 = vmatmul.mubr.f32.gmra.mrb[0].mxu0 %v534
        %v659 = vpop.f32.mrb[0].mxu0
        %v660 = vadd.f32 %v498, %v659
        %v661 = vpop.f32.mrb[0].mxu0
        %v662 = vadd.f32 %v502, %v661
        %663 = vmatprep.mubr.f32.mxu0 0.0
        %664 = vmatmul.mubr.f32.gmra.mrb[0].mxu0 %v537
        %v665 = vpop.f32.mrb[0].mxu0
        %v666 = vadd.f32 %v498, %v665
        %v667 = vpop.f32.mrb[0].mxu0
        %v668 = vadd.f32 %v502, %v667
        %669 = vmatprep.mubr.f32.mxu0 0.0
        %670 = vmatmul.mubr.f32.gmra.mrb[0].mxu0 %v540
        %v671 = vpop.f32.mrb[0].mxu0
        %v672 = vadd.f32 %v498, %v671
        %v673 = vpop.f32.mrb[0].mxu0
        %v674 = vadd.f32 %v502, %v673
        %675 = vmatprep.mubr.f32.mxu0 0.0
        %676 = vmatmul.mubr.f32.gmra.mrb[0].mxu0 %v543
        %v677 = vpop.f32.mrb[0].mxu0
        %v678 = vadd.f32 %v498, %v677
        %v679 = vpop.f32.mrb[0].mxu0
        %v680 = vadd.f32 %v502, %v679
        %681 = vmatprep.mubr.f32.mxu0 0.0
        %682 = vmatmul.mubr.f32.gmra.mrb[0].mxu0 %v546
        %v683 = vpop.f32.mrb[0].mxu0
        %v684 = vadd.f32 %v498, %v683
        %v685 = vpop.f32.mrb[0].mxu0
        %v686 = vadd.f32 %v502, %v685
        %687 = vmatprep.mubr.f32.mxu0 0.0
        %688 = vmatmul.mubr.f32.gmra.mrb[0].mxu0 %v549
        %v689 = vpop.f32.mrb[0].mxu0
        %v690 = vadd.f32 %v498, %v689
        %v691 = vpop.f32.mrb[0].mxu0
        %v692 = vadd.f32 %v502, %v691
        %693 = vmatprep.mubr.f32.mxu0 0.0
        %694 = vmatmul.mubr.f32.gmra.mrb[0].mxu0 %v552
        %v695 = vpop.f32.mrb[0].mxu0
        %v696 = vadd.f32 %v498, %v695
        %v697 = vpop.f32.mrb[0].mxu0
        %v698 = vadd.f32 %v502, %v697
        %699 = vmatprep.mubr.f32.mxu0 0.0
        %700 = vmatmul.mubr.f32.gmra.mrb[0].mxu0 %v555
        %v701 = vpop.f32.mrb[0].mxu0
        %v702 = vadd.f32 %v498, %v701
        %v703 = vpop.f32.mrb[0].mxu0
        %v704 = vadd.f32 %v502, %v703
        %705 = vmatprep.mubr.f32.mxu0 0.0
        %706 = vmatmul.mubr.f32.gmra.mrb[0].mxu0 %v558
        %v707 = vpop.f32.mrb[0].mxu0
        %v708 = vadd.f32 %v498, %v707
        %v709 = vpop.f32.mrb[0].mxu0
        %v710 = vadd.f32 %v502, %v709
        %711 = vmatprep.mubr.f32.mxu0 0.0
        %712 = vmatmul.mubr.f32.gmra.mrb[0].mxu0 %v561
        %v713 = vpop.f32.mrb[0].mxu0
        %v714 = vadd.f32 %v498, %v713
        %v715 = vpop.f32.mrb[0].mxu0
        %v716 = vadd.f32 %v502, %v715
        %717 = vmatprep.mubr.f32.mxu0 0.0
        %718 = vmatmul.mubr.f32.gmra.mrb[0].mxu0 %v564
        %v719 = vpop.f32.mrb[0].mxu0
        %v720 = vadd.f32 %v498, %v719
        %v721 = vpop.f32.mrb[0].mxu0
        %v722 = vadd.f32 %v502, %v721
        %723 = vmatprep.mubr.f32.mxu0 0.0
        %724 = vmatmul.mubr.f32.gmra.mrb[0].mxu0 %v567
        %v725 = vpop.f32.mrb[0].mxu0
        %v726 = vadd.f32 %v498, %v725
        %v727 = vpop.f32.mrb[0].mxu0
        %v728 = vadd.f32 %v502, %v727
        %729 = vdwg.mxu0
        %730 = vmatprep.subr.mxu0 %v486
        %731 = vmatpush1.msra.mxu0 %v485
        %732 = vmatprep.subr.mxu0 %v491
        %733 = vmatpush1.msra.mxu0 %v490
        %734 = vmatprep.subr.mxu0 0.0
        %735 = vmatpush1.msra.mxu0 0.0
        %736 = vmatprep.subr.mxu0 0.0
        %737 = vmatpush1.msra.mxu0 0.0
        %738 = vmatprep.subr.mxu0 0.0
        %739 = vmatpush1.msra.mxu0 0.0
        %740 = vmatprep.subr.mxu0 0.0
        %741 = vmatpush1.msra.mxu0 0.0
        %742 = vmatprep.subr.mxu0 0.0
        %743 = vmatpush1.msra.mxu0 0.0
        %744 = vmatprep.subr.mxu0 0.0
        %745 = vmatpush1.msra.mxu0 0.0
        %746 = vmatprep.subr.mxu0 0.0
        %747 = vmatpush1.msra.mxu0 0.0
        %748 = vmatprep.subr.mxu0 0.0
        %749 = vmatpush1.msra.mxu0 0.0
        %750 = vmatprep.subr.mxu0 0.0
        %751 = vmatpush1.msra.mxu0 0.0
        %752 = vmatprep.subr.mxu0 0.0
        %753 = vmatpush1.msra.mxu0 0.0
        %754 = vmatprep.subr.mxu0 0.0
        %755 = vmatpush1.msra.mxu0 0.0
        %756 = vmatprep.subr.mxu0 0.0
        %757 = vmatpush1.msra.mxu0 0.0
        %758 = vmatprep.subr.mxu0 0.0
        %759 = vmatpush1.msra.mxu0 0.0
        %760 = vmatprep.subr.mxu0 0.0
        %761 = vmatpush1.msra.mxu0 0.0
        %762 = vmatprep.subr.mxu0 0.0
        %763 = vmatpush1.msra.mxu0 0.0
        %764 = vmatprep.subr.mxu0 0.0
        %765 = vmatpush1.msra.mxu0 0.0
        %766 = vmatprep.subr.mxu0 0.0
        %767 = vmatpush1.msra.mxu0 0.0
        %768 = vmatprep.subr.mxu0 0.0
        %769 = vmatpush1.msra.mxu0 0.0
        %770 = vmatprep.subr.mxu0 0.0
        %771 = vmatpush1.msra.mxu0 0.0
        %772 = vmatprep.subr.mxu0 0.0
        %773 = vmatpush1.msra.mxu0 0.0
        %774 = vmatprep.subr.mxu0 0.0
        %775 = vmatpush1.msra.mxu0 0.0
        %776 = vmatprep.subr.mxu0 0.0
        %777 = vmatpush1.msra.mxu0 0.0
        %778 = vmatprep.subr.mxu0 0.0
        %779 = vmatpush1.msra.mxu0 0.0
        %780 = vmatprep.subr.mxu0 0.0
        %781 = vmatpush1.msra.mxu0 0.0
        %782 = vmatprep.subr.mxu0 0.0
        %783 = vmatpush1.msra.mxu0 0.0
        %784 = vmatprep.subr.mxu0 0.0
        %785 = vmatpush1.msra.mxu0 0.0
        %786 = vmatprep.subr.mxu0 0.0
        %787 = vmatpush1.msra.mxu0 0.0
        %788 = vmatprep.subr.mxu0 0.0
        %789 = vmatpush1.msra.mxu0 0.0
        %790 = vmatprep.subr.mxu0 0.0
        %791 = vmatpush1.msra.mxu0 0.0
        %792 = vmatprep.subr.mxu0 0.0
        %793 = vmatpush1.msra.mxu0 0.0
        %794 = vmatprep.mubr.f32.mxu0 0.0
        %795 = vmatmul.mubr.f32.gmra.mrb[0].mxu0 %v522
        %v796 = vpop.f32.mrb[0].mxu0
        %v797 = vadd.f32 %v506, %v796
        %v798 = vpop.f32.mrb[0].mxu0
        %v799 = vadd.f32 %v510, %v798
        %800 = vmatprep.mubr.f32.mxu0 0.0
        %801 = vmatmul.mubr.f32.gmra.mrb[0].mxu0 %v525
        %v802 = vpop.f32.mrb[0].mxu0
        %v803 = vadd.f32 %v506, %v802
        %v804 = vpop.f32.mrb[0].mxu0
        %v805 = vadd.f32 %v510, %v804
        %806 = vmatprep.mubr.f32.mxu0 0.0
        %807 = vmatmul.mubr.f32.gmra.mrb[0].mxu0 %v528
        %v808 = vpop.f32.mrb[0].mxu0
        %v809 = vadd.f32 %v506, %v808
        %v810 = vpop.f32.mrb[0].mxu0
        %v811 = vadd.f32 %v510, %v810
        %812 = vmatprep.mubr.f32.mxu0 0.0
        %813 = vmatmul.mubr.f32.gmra.mrb[0].mxu0 %v531
        %v814 = vpop.f32.mrb[0].mxu0
        %v815 = vadd.f32 %v506, %v814
        %v816 = vpop.f32.mrb[0].mxu0
        %v817 = vadd.f32 %v510, %v816
        %818 = vmatprep.mubr.f32.mxu0 0.0
        %819 = vmatmul.mubr.f32.gmra.mrb[0].mxu0 %v534
        %v820 = vpop.f32.mrb[0].mxu0
        %v821 = vadd.f32 %v506, %v820
        %v822 = vpop.f32.mrb[0].mxu0
        %v823 = vadd.f32 %v510, %v822
        %824 = vmatprep.mubr.f32.mxu0 0.0
        %825 = vmatmul.mubr.f32.gmra.mrb[0].mxu0 %v537
        %v826 = vpop.f32.mrb[0].mxu0
        %v827 = vadd.f32 %v506, %v826
        %v828 = vpop.f32.mrb[0].mxu0
        %v829 = vadd.f32 %v510, %v828
        %830 = vmatprep.mubr.f32.mxu0 0.0
        %831 = vmatmul.mubr.f32.gmra.mrb[0].mxu0 %v540
        %v832 = vpop.f32.mrb[0].mxu0
        %v833 = vadd.f32 %v506, %v832
        %v834 = vpop.f32.mrb[0].mxu0
        %v835 = vadd.f32 %v510, %v834
        %836 = vmatprep.mubr.f32.mxu0 0.0
        %837 = vmatmul.mubr.f32.gmra.mrb[0].mxu0 %v543
        %v838 = vpop.f32.mrb[0].mxu0
        %v839 = vadd.f32 %v506, %v838
        %v840 = vpop.f32.mrb[0].mxu0
        %v841 = vadd.f32 %v510, %v840
        %842 = vmatprep.mubr.f32.mxu0 0.0
        %843 = vmatmul.mubr.f32.gmra.mrb[0].mxu0 %v546
        %v844 = vpop.f32.mrb[0].mxu0
        %v845 = vadd.f32 %v506, %v844
        %v846 = vpop.f32.mrb[0].mxu0
        %v847 = vadd.f32 %v510, %v846
        %848 = vmatprep.mubr.f32.mxu0 0.0
        %849 = vmatmul.mubr.f32.gmra.mrb[0].mxu0 %v549
        %v850 = vpop.f32.mrb[0].mxu0
        %v851 = vadd.f32 %v506, %v850
        %v852 = vpop.f32.mrb[0].mxu0
        %v853 = vadd.f32 %v510, %v852
        %854 = vmatprep.mubr.f32.mxu0 0.0
        %855 = vmatmul.mubr.f32.gmra.mrb[0].mxu0 %v552
        %v856 = vpop.f32.mrb[0].mxu0
        %v857 = vadd.f32 %v506, %v856
        %v858 = vpop.f32.mrb[0].mxu0
        %v859 = vadd.f32 %v510, %v858
        %860 = vmatprep.mubr.f32.mxu0 0.0
        %861 = vmatmul.mubr.f32.gmra.mrb[0].mxu0 %v555
        %v862 = vpop.f32.mrb[0].mxu0
        %v863 = vadd.f32 %v506, %v862
        %v864 = vpop.f32.mrb[0].mxu0
        %v865 = vadd.f32 %v510, %v864
        %866 = vmatprep.mubr.f32.mxu0 0.0
        %867 = vmatmul.mubr.f32.gmra.mrb[0].mxu0 %v558
        %v868 = vpop.f32.mrb[0].mxu0
        %v869 = vadd.f32 %v506, %v868
        %v870 = vpop.f32.mrb[0].mxu0
        %v871 = vadd.f32 %v510, %v870
        %872 = vmatprep.mubr.f32.mxu0 0.0
        %873 = vmatmul.mubr.f32.gmra.mrb[0].mxu0 %v561
        %v874 = vpop.f32.mrb[0].mxu0
        %v875 = vadd.f32 %v506, %v874
        %v876 = vpop.f32.mrb[0].mxu0
        %v877 = vadd.f32 %v510, %v876
        %878 = vmatprep.mubr.f32.mxu0 0.0
        %879 = vmatmul.mubr.f32.gmra.mrb[0].mxu0 %v564
        %v880 = vpop.f32.mrb[0].mxu0
        %v881 = vadd.f32 %v506, %v880
        %v882 = vpop.f32.mrb[0].mxu0
        %v883 = vadd.f32 %v510, %v882
        %884 = vmatprep.mubr.f32.mxu0 0.0
        %885 = vmatmul.mubr.f32.gmra.mrb[0].mxu0 %v567
        %v886 = vpop.f32.mrb[0].mxu0
        %v887 = vadd.f32 %v506, %v886
        %v888 = vpop.f32.mrb[0].mxu0
        %v889 = vadd.f32 %v510, %v888
        %890 = vdwg.mxu0
        %891 = vmatprep.subr.mxu0 0.0
        %892 = vmatpush1.msra.mxu0 %v487
        %893 = vmatprep.subr.mxu0 0.0
        %894 = vmatpush1.msra.mxu0 %v492
        %895 = vmatprep.subr.mxu0 0.0
        %896 = vmatpush1.msra.mxu0 0.0
        %897 = vmatprep.subr.mxu0 0.0
        %898 = vmatpush1.msra.mxu0 0.0
        %899 = vmatprep.subr.mxu0 0.0
        %900 = vmatpush1.msra.mxu0 0.0
        %901 = vmatprep.subr.mxu0 0.0
        %902 = vmatpush1.msra.mxu0 0.0
        %903 = vmatprep.subr.mxu0 0.0
        %904 = vmatpush1.msra.mxu0 0.0
        %905 = vmatprep.subr.mxu0 0.0
        %906 = vmatpush1.msra.mxu0 0.0
        %907 = vmatprep.subr.mxu0 0.0
        %908 = vmatpush1.msra.mxu0 0.0
        %909 = vmatprep.subr.mxu0 0.0
        %910 = vmatpush1.msra.mxu0 0.0
        %911 = vmatprep.subr.mxu0 0.0
        %912 = vmatpush1.msra.mxu0 0.0
        %913 = vmatprep.subr.mxu0 0.0
        %914 = vmatpush1.msra.mxu0 0.0
        %915 = vmatprep.subr.mxu0 0.0
        %916 = vmatpush1.msra.mxu0 0.0
        %917 = vmatprep.subr.mxu0 0.0
        %918 = vmatpush1.msra.mxu0 0.0
        %919 = vmatprep.subr.mxu0 0.0
        %920 = vmatpush1.msra.mxu0 0.0
        %921 = vmatprep.subr.mxu0 0.0
        %922 = vmatpush1.msra.mxu0 0.0
        %923 = vmatprep.subr.mxu0 0.0
        %924 = vmatpush1.msra.mxu0 0.0
        %925 = vmatprep.subr.mxu0 0.0
        %926 = vmatpush1.msra.mxu0 0.0
        %927 = vmatprep.subr.mxu0 0.0
        %928 = vmatpush1.msra.mxu0 0.0
        %929 = vmatprep.subr.mxu0 0.0
        %930 = vmatpush1.msra.mxu0 0.0
        %931 = vmatprep.subr.mxu0 0.0
        %932 = vmatpush1.msra.mxu0 0.0
        %933 = vmatprep.subr.mxu0 0.0
        %934 = vmatpush1.msra.mxu0 0.0
        %935 = vmatprep.subr.mxu0 0.0
        %936 = vmatpush1.msra.mxu0 0.0
        %937 = vmatprep.subr.mxu0 0.0
        %938 = vmatpush1.msra.mxu0 0.0
        %939 = vmatprep.subr.mxu0 0.0
        %940 = vmatpush1.msra.mxu0 0.0
        %941 = vmatprep.subr.mxu0 0.0
        %942 = vmatpush1.msra.mxu0 0.0
        %943 = vmatprep.subr.mxu0 0.0
        %944 = vmatpush1.msra.mxu0 0.0
        %945 = vmatprep.subr.mxu0 0.0
        %946 = vmatpush1.msra.mxu0 0.0
        %947 = vmatprep.subr.mxu0 0.0
        %948 = vmatpush1.msra.mxu0 0.0
        %949 = vmatprep.subr.mxu0 0.0
        %950 = vmatpush1.msra.mxu0 0.0
        %951 = vmatprep.subr.mxu0 0.0
        %952 = vmatpush1.msra.mxu0 0.0
        %953 = vmatprep.subr.mxu0 0.0
        %954 = vmatpush1.msra.mxu0 0.0
        %955 = vmatprep.mubr.f32.mxu0 0.0
        %956 = vmatmul.mubr.f32.gmra.mrb[0].mxu0 %v522
        %v957 = vpop.f32.mrb[0].mxu0
        %v958 = vadd.f32 %v514, %v957
        %v959 = vpop.f32.mrb[0].mxu0
        %960 = vmatprep.mubr.f32.mxu0 0.0
        %961 = vmatmul.mubr.f32.gmra.mrb[0].mxu0 %v525
        %v962 = vpop.f32.mrb[0].mxu0
        %v963 = vadd.f32 %v514, %v962
        %v964 = vpop.f32.mrb[0].mxu0
        %965 = vmatprep.mubr.f32.mxu0 0.0
        %966 = vmatmul.mubr.f32.gmra.mrb[0].mxu0 %v528
        %v967 = vpop.f32.mrb[0].mxu0
        %v968 = vadd.f32 %v514, %v967
        %v969 = vpop.f32.mrb[0].mxu0
        %970 = vmatprep.mubr.f32.mxu0 0.0
        %971 = vmatmul.mubr.f32.gmra.mrb[0].mxu0 %v531
        %v972 = vpop.f32.mrb[0].mxu0
        %v973 = vadd.f32 %v514, %v972
        %v974 = vpop.f32.mrb[0].mxu0
        %975 = vmatprep.mubr.f32.mxu0 0.0
        %976 = vmatmul.mubr.f32.gmra.mrb[0].mxu0 %v534
        %v977 = vpop.f32.mrb[0].mxu0
        %v978 = vadd.f32 %v514, %v977
        %v979 = vpop.f32.mrb[0].mxu0
        %980 = vmatprep.mubr.f32.mxu0 0.0
        %981 = vmatmul.mubr.f32.gmra.mrb[0].mxu0 %v537
        %v982 = vpop.f32.mrb[0].mxu0
        %v983 = vadd.f32 %v514, %v982
        %v984 = vpop.f32.mrb[0].mxu0
        %985 = vmatprep.mubr.f32.mxu0 0.0
        %986 = vmatmul.mubr.f32.gmra.mrb[0].mxu0 %v540
        %v987 = vpop.f32.mrb[0].mxu0
        %v988 = vadd.f32 %v514, %v987
        %v989 = vpop.f32.mrb[0].mxu0
        %990 = vmatprep.mubr.f32.mxu0 0.0
        %991 = vmatmul.mubr.f32.gmra.mrb[0].mxu0 %v543
        %v992 = vpop.f32.mrb[0].mxu0
        %v993 = vadd.f32 %v514, %v992
        %v994 = vpop.f32.mrb[0].mxu0
        %995 = vmatprep.mubr.f32.mxu0 0.0
        %996 = vmatmul.mubr.f32.gmra.mrb[0].mxu0 %v546
        %v997 = vpop.f32.mrb[0].mxu0
        %v998 = vadd.f32 %v514, %v997
        %v999 = vpop.f32.mrb[0].mxu0
        %1000 = vmatprep.mubr.f32.mxu0 0.0
        %1001 = vmatmul.mubr.f32.gmra.mrb[0].mxu0 %v549
        %v1002 = vpop.f32.mrb[0].mxu0
        %v1003 = vadd.f32 %v514, %v1002
        %v1004 = vpop.f32.mrb[0].mxu0
        %1005 = vmatprep.mubr.f32.mxu0 0.0
        %1006 = vmatmul.mubr.f32.gmra.mrb[0].mxu0 %v552
        %v1007 = vpop.f32.mrb[0].mxu0
        %v1008 = vadd.f32 %v514, %v1007
        %v1009 = vpop.f32.mrb[0].mxu0
        %1010 = vmatprep.mubr.f32.mxu0 0.0
        %1011 = vmatmul.mubr.f32.gmra.mrb[0].mxu0 %v555
        %v1012 = vpop.f32.mrb[0].mxu0
        %v1013 = vadd.f32 %v514, %v1012
        %v1014 = vpop.f32.mrb[0].mxu0
        %1015 = vmatprep.mubr.f32.mxu0 0.0
        %1016 = vmatmul.mubr.f32.gmra.mrb[0].mxu0 %v558
        %v1017 = vpop.f32.mrb[0].mxu0
        %v1018 = vadd.f32 %v514, %v1017
        %v1019 = vpop.f32.mrb[0].mxu0
        %1020 = vmatprep.mubr.f32.mxu0 0.0
        %1021 = vmatmul.mubr.f32.gmra.mrb[0].mxu0 %v561
        %v1022 = vpop.f32.mrb[0].mxu0
        %v1023 = vadd.f32 %v514, %v1022
        %v1024 = vpop.f32.mrb[0].mxu0
        %1025 = vmatprep.mubr.f32.mxu0 0.0
        %1026 = vmatmul.mubr.f32.gmra.mrb[0].mxu0 %v564
        %v1027 = vpop.f32.mrb[0].mxu0
        %v1028 = vadd.f32 %v514, %v1027
        %v1029 = vpop.f32.mrb[0].mxu0
        %1030 = vmatprep.mubr.f32.mxu0 0.0
        %1031 = vmatmul.mubr.f32.gmra.mrb[0].mxu0 %v567
        %v1032 = vpop.f32.mrb[0].mxu0
        %v1033 = vadd.f32 %v514, %v1032
        %v1034 = vpop.f32.mrb[0].mxu0
        %1035 = vdwg.mxu0
        %1036 = vst.msk [vmem:[#allocation2] sm:$0xff] %vm273, 0.0
        %1037 = vst.msk [vmem:[#allocation2 + $0x8] sm:$0xff] %vm273, 0.0
        %1038 = vst.msk [vmem:[#allocation2 + $0x10] sm:$0xff] %vm273, 0.0
        %1039 = vst.msk [vmem:[#allocation2 + $0x18] sm:$0xff] %vm273, 0.0
        %1040 = vst.msk [vmem:[#allocation2 + $0x20] sm:$0xff] %vm273, 0.0
        %1041 = vst.msk [vmem:[#allocation2 + $0x28] sm:$0xff] %vm273, 0.0
        %1042 = vst.msk [vmem:[#allocation2 + $0x30] sm:$0xff] %vm273, 0.0
        %1043 = vst.msk [vmem:[#allocation2 + $0x38] sm:$0xff] %vm273, 0.0
        %1044 = vst.msk [vmem:[#allocation2 + $0x40] sm:$0xff] %vm273, 0.0
        %1045 = vst.msk [vmem:[#allocation2 + $0x48] sm:$0xff] %vm273, 0.0
        %1046 = vst.msk [vmem:[#allocation2 + $0x50] sm:$0xff] %vm273, 0.0
        %1047 = vst.msk [vmem:[#allocation2 + $0x58] sm:$0xff] %vm273, 0.0
        %1048 = vst.msk [vmem:[#allocation2 + $0x60] sm:$0xff] %vm273, 0.0
        %1049 = vst.msk [vmem:[#allocation2 + $0x68] sm:$0xff] %vm273, 0.0
        %1050 = vst.msk [vmem:[#allocation2 + $0x70] sm:$0xff] %vm273, 0.0
        %1051 = vst.msk [vmem:[#allocation2 + $0x78] sm:$0xff] %vm273, 0.0
        %s1052 = smul.u32 %s238, 24
        %s1053 = scalar_lea.vmem %s236, %s1052
        %v1054 = vld [vmem:[%s1053] sm:$0xff]
        %v1055 = vld [vmem:[%s1053 + $0x8] sm:$0xff]
        %v1056 = vld [vmem:[%s1053 + $0x18] sm:$0xff]
        %v1057 = vld [vmem:[%s1053 + $0x20] sm:$0xff]
        %v1058 = vld [vmem:[%s1053 + $0x30] sm:$0xff]
        %v1059 = vld [vmem:[%s1053 + $0x38] sm:$0xff]
        %v1060 = vld [vmem:[%s1053 + $0x48] sm:$0xff]
        %v1061 = vld [vmem:[%s1053 + $0x50] sm:$0xff]
        %v1062 = vld [vmem:[%s1053 + $0x60] sm:$0xff]
        %v1063 = vld [vmem:[%s1053 + $0x68] sm:$0xff]
        %v1064 = vld [vmem:[%s1053 + $0x78] sm:$0xff]
        %v1065 = vld [vmem:[%s1053 + $0x80] sm:$0xff]
        %v1066 = vld [vmem:[%s1053 + $0x90] sm:$0xff]
        %v1067 = vld [vmem:[%s1053 + $0x98] sm:$0xff]
        %v1068 = vld [vmem:[%s1053 + $0xa8] sm:$0xff]
        %v1069 = vld [vmem:[%s1053 + $0xb0] sm:$0xff]
        %v1070 = vld [vmem:[#allocation2] sm:$0xff]
        %v1071 = vld [vmem:[#allocation2 + $0x8] sm:$0xff]
        %v1072 = vld [vmem:[#allocation2 + $0x10] sm:$0xff]
        %v1073 = vld [vmem:[#allocation2 + $0x18] sm:$0xff]
        %v1074 = vld [vmem:[#allocation2 + $0x20] sm:$0xff]
        %v1075 = vld [vmem:[#allocation2 + $0x28] sm:$0xff]
        %v1076 = vld [vmem:[#allocation2 + $0x30] sm:$0xff]
        %v1077 = vld [vmem:[#allocation2 + $0x38] sm:$0xff]
        %v1078 = vld [vmem:[#allocation2 + $0x40] sm:$0xff]
        %v1079 = vld [vmem:[#allocation2 + $0x48] sm:$0xff]
        %v1080 = vld [vmem:[#allocation2 + $0x50] sm:$0xff]
        %v1081 = vld [vmem:[#allocation2 + $0x58] sm:$0xff]
        %v1082 = vld [vmem:[#allocation2 + $0x60] sm:$0xff]
        %v1083 = vld [vmem:[#allocation2 + $0x68] sm:$0xff]
        %v1084 = vld [vmem:[#allocation2 + $0x70] sm:$0xff]
        %v1085 = vld [vmem:[#allocation2 + $0x78] sm:$0xff]
        %v1086 = vmul.f32 %v636, %v1054
        %v1087 = vmul.f32 %v642, %v1055
        %v1088 = vmul.f32 %v648, %v1056
        %v1089 = vmul.f32 %v654, %v1057
        %v1090 = vmul.f32 %v660, %v1058
        %v1091 = vmul.f32 %v666, %v1059
        %v1092 = vmul.f32 %v672, %v1060
        %v1093 = vmul.f32 %v678, %v1061
        %v1094 = vmul.f32 %v684, %v1062
        %v1095 = vmul.f32 %v690, %v1063
        %v1096 = vmul.f32 %v696, %v1064
        %v1097 = vmul.f32 %v702, %v1065
        %v1098 = vmul.f32 %v708, %v1066
        %v1099 = vmul.f32 %v714, %v1067
        %v1100 = vmul.f32 %v720, %v1068
        %v1101 = vmul.f32 %v726, %v1069
        %v1102 = vadd.f32 %v1070, %v1086
        %v1103 = vadd.f32 %v1071, %v1087
        %v1104 = vadd.f32 %v1072, %v1088
        %v1105 = vadd.f32 %v1073, %v1089
        %v1106 = vadd.f32 %v1074, %v1090
        %v1107 = vadd.f32 %v1075, %v1091
        %v1108 = vadd.f32 %v1076, %v1092
        %v1109 = vadd.f32 %v1077, %v1093
        %v1110 = vadd.f32 %v1078, %v1094
        %v1111 = vadd.f32 %v1079, %v1095
        %v1112 = vadd.f32 %v1080, %v1096
        %v1113 = vadd.f32 %v1081, %v1097
        %v1114 = vadd.f32 %v1082, %v1098
        %v1115 = vadd.f32 %v1083, %v1099
        %v1116 = vadd.f32 %v1084, %v1100
        %v1117 = vadd.f32 %v1085, %v1101
        %1118 = vst.msk [vmem:[#allocation2] sm:$0xff] %vm273, %v1102
        %1119 = vst.msk [vmem:[#allocation2 + $0x8] sm:$0xff] %vm273, %v1103
        %1120 = vst.msk [vmem:[#allocation2 + $0x10] sm:$0xff] %vm273, %v1104
        %1121 = vst.msk [vmem:[#allocation2 + $0x18] sm:$0xff] %vm273, %v1105
        %1122 = vst.msk [vmem:[#allocation2 + $0x20] sm:$0xff] %vm273, %v1106
        %1123 = vst.msk [vmem:[#allocation2 + $0x28] sm:$0xff] %vm273, %v1107
        %1124 = vst.msk [vmem:[#allocation2 + $0x30] sm:$0xff] %vm273, %v1108
        %1125 = vst.msk [vmem:[#allocation2 + $0x38] sm:$0xff] %vm273, %v1109
        %1126 = vst.msk [vmem:[#allocation2 + $0x40] sm:$0xff] %vm273, %v1110
        %1127 = vst.msk [vmem:[#allocation2 + $0x48] sm:$0xff] %vm273, %v1111
        %1128 = vst.msk [vmem:[#allocation2 + $0x50] sm:$0xff] %vm273, %v1112
        %1129 = vst.msk [vmem:[#allocation2 + $0x58] sm:$0xff] %vm273, %v1113
        %1130 = vst.msk [vmem:[#allocation2 + $0x60] sm:$0xff] %vm273, %v1114
        %1131 = vst.msk [vmem:[#allocation2 + $0x68] sm:$0xff] %vm273, %v1115
        %1132 = vst.msk [vmem:[#allocation2 + $0x70] sm:$0xff] %vm273, %v1116
        %1133 = vst.msk [vmem:[#allocation2 + $0x78] sm:$0xff] %vm273, %v1117
        %v1134 = vld [vmem:[%s1053 + $0x1] sm:$0xff]
        %v1135 = vld [vmem:[%s1053 + $0x9] sm:$0xff]
        %v1136 = vld [vmem:[%s1053 + $0x19] sm:$0xff]
        %v1137 = vld [vmem:[%s1053 + $0x21] sm:$0xff]
        %v1138 = vld [vmem:[%s1053 + $0x31] sm:$0xff]
        %v1139 = vld [vmem:[%s1053 + $0x39] sm:$0xff]
        %v1140 = vld [vmem:[%s1053 + $0x49] sm:$0xff]
        %v1141 = vld [vmem:[%s1053 + $0x51] sm:$0xff]
        %v1142 = vld [vmem:[%s1053 + $0x61] sm:$0xff]
        %v1143 = vld [vmem:[%s1053 + $0x69] sm:$0xff]
        %v1144 = vld [vmem:[%s1053 + $0x79] sm:$0xff]
        %v1145 = vld [vmem:[%s1053 + $0x81] sm:$0xff]
        %v1146 = vld [vmem:[%s1053 + $0x91] sm:$0xff]
        %v1147 = vld [vmem:[%s1053 + $0x99] sm:$0xff]
        %v1148 = vld [vmem:[%s1053 + $0xa9] sm:$0xff]
        %v1149 = vld [vmem:[%s1053 + $0xb1] sm:$0xff]
        %v1150 = vld [vmem:[#allocation2] sm:$0xff]
        %v1151 = vld [vmem:[#allocation2 + $0x8] sm:$0xff]
        %v1152 = vld [vmem:[#allocation2 + $0x10] sm:$0xff]
        %v1153 = vld [vmem:[#allocation2 + $0x18] sm:$0xff]
        %v1154 = vld [vmem:[#allocation2 + $0x20] sm:$0xff]
        %v1155 = vld [vmem:[#allocation2 + $0x28] sm:$0xff]
        %v1156 = vld [vmem:[#allocation2 + $0x30] sm:$0xff]
        %v1157 = vld [vmem:[#allocation2 + $0x38] sm:$0xff]
        %v1158 = vld [vmem:[#allocation2 + $0x40] sm:$0xff]
        %v1159 = vld [vmem:[#allocation2 + $0x48] sm:$0xff]
        %v1160 = vld [vmem:[#allocation2 + $0x50] sm:$0xff]
        %v1161 = vld [vmem:[#allocation2 + $0x58] sm:$0xff]
        %v1162 = vld [vmem:[#allocation2 + $0x60] sm:$0xff]
        %v1163 = vld [vmem:[#allocation2 + $0x68] sm:$0xff]
        %v1164 = vld [vmem:[#allocation2 + $0x70] sm:$0xff]
        %v1165 = vld [vmem:[#allocation2 + $0x78] sm:$0xff]
        %1182 = vrot.lane.b32.xlu0 %v1134, 64
        %v1183 = vpop.permute.xlu0 %1182
        %1184 = vrot.lane.b32.xlu0 %v1135, 64
        %v1185 = vpop.permute.xlu0 %1184
        %1186 = vrot.lane.b32.xlu0 %v1136, 64
        %v1187 = vpop.permute.xlu0 %1186
        %1188 = vrot.lane.b32.xlu0 %v1137, 64
        %v1189 = vpop.permute.xlu0 %1188
        %1190 = vrot.lane.b32.xlu0 %v1138, 64
        %v1191 = vpop.permute.xlu0 %1190
        %1192 = vrot.lane.b32.xlu0 %v1139, 64
        %v1193 = vpop.permute.xlu0 %1192
        %1194 = vrot.lane.b32.xlu0 %v1140, 64
        %v1195 = vpop.permute.xlu0 %1194
        %1196 = vrot.lane.b32.xlu0 %v1141, 64
        %v1197 = vpop.permute.xlu0 %1196
        %1198 = vrot.lane.b32.xlu0 %v1142, 64
        %v1199 = vpop.permute.xlu0 %1198
        %1200 = vrot.lane.b32.xlu0 %v1143, 64
        %v1201 = vpop.permute.xlu0 %1200
        %1202 = vrot.lane.b32.xlu0 %v1144, 64
        %v1203 = vpop.permute.xlu0 %1202
        %1204 = vrot.lane.b32.xlu0 %v1145, 64
        %v1205 = vpop.permute.xlu0 %1204
        %1206 = vrot.lane.b32.xlu0 %v1146, 64
        %v1207 = vpop.permute.xlu0 %1206
        %1208 = vrot.lane.b32.xlu0 %v1147, 64
        %v1209 = vpop.permute.xlu0 %1208
        %1210 = vrot.lane.b32.xlu0 %v1148, 64
        %v1211 = vpop.permute.xlu0 %1210
        %1212 = vrot.lane.b32.xlu0 %v1149, 64
        %v1213 = vpop.permute.xlu0 %1212
        %v1230 = vmul.f32 %v636, %v1183
        %v1231 = vmul.f32 %v642, %v1185
        %v1232 = vmul.f32 %v648, %v1187
        %v1233 = vmul.f32 %v654, %v1189
        %v1234 = vmul.f32 %v660, %v1191
        %v1235 = vmul.f32 %v666, %v1193
        %v1236 = vmul.f32 %v672, %v1195
        %v1237 = vmul.f32 %v678, %v1197
        %v1238 = vmul.f32 %v684, %v1199
        %v1239 = vmul.f32 %v690, %v1201
        %v1240 = vmul.f32 %v696, %v1203
        %v1241 = vmul.f32 %v702, %v1205
        %v1242 = vmul.f32 %v708, %v1207
        %v1243 = vmul.f32 %v714, %v1209
        %v1244 = vmul.f32 %v720, %v1211
        %v1245 = vmul.f32 %v726, %v1213
        %1262 = vrot.lane.b32.xlu0 %v1230, 64
        %v1263 = vpop.permute.xlu0 %1262
        %1264 = vrot.lane.b32.xlu0 %v1231, 64
        %v1265 = vpop.permute.xlu0 %1264
        %1266 = vrot.lane.b32.xlu0 %v1232, 64
        %v1267 = vpop.permute.xlu0 %1266
        %1268 = vrot.lane.b32.xlu0 %v1233, 64
        %v1269 = vpop.permute.xlu0 %1268
        %1270 = vrot.lane.b32.xlu0 %v1234, 64
        %v1271 = vpop.permute.xlu0 %1270
        %1272 = vrot.lane.b32.xlu0 %v1235, 64
        %v1273 = vpop.permute.xlu0 %1272
        %1274 = vrot.lane.b32.xlu0 %v1236, 64
        %v1275 = vpop.permute.xlu0 %1274
        %1276 = vrot.lane.b32.xlu0 %v1237, 64
        %v1277 = vpop.permute.xlu0 %1276
        %1278 = vrot.lane.b32.xlu0 %v1238, 64
        %v1279 = vpop.permute.xlu0 %1278
        %1280 = vrot.lane.b32.xlu0 %v1239, 64
        %v1281 = vpop.permute.xlu0 %1280
        %1282 = vrot.lane.b32.xlu0 %v1240, 64
        %v1283 = vpop.permute.xlu0 %1282
        %1284 = vrot.lane.b32.xlu0 %v1241, 64
        %v1285 = vpop.permute.xlu0 %1284
        %1286 = vrot.lane.b32.xlu0 %v1242, 64
        %v1287 = vpop.permute.xlu0 %1286
        %1288 = vrot.lane.b32.xlu0 %v1243, 64
        %v1289 = vpop.permute.xlu0 %1288
        %1290 = vrot.lane.b32.xlu0 %v1244, 64
        %v1291 = vpop.permute.xlu0 %1290
        %1292 = vrot.lane.b32.xlu0 %v1245, 64
        %v1293 = vpop.permute.xlu0 %1292
        %v1310 = vadd.f32 %v1150, %v1263
        %v1311 = vadd.f32 %v1151, %v1265
        %v1312 = vadd.f32 %v1152, %v1267
        %v1313 = vadd.f32 %v1153, %v1269
        %v1314 = vadd.f32 %v1154, %v1271
        %v1315 = vadd.f32 %v1155, %v1273
        %v1316 = vadd.f32 %v1156, %v1275
        %v1317 = vadd.f32 %v1157, %v1277
        %v1318 = vadd.f32 %v1158, %v1279
        %v1319 = vadd.f32 %v1159, %v1281
        %v1320 = vadd.f32 %v1160, %v1283
        %v1321 = vadd.f32 %v1161, %v1285
        %v1322 = vadd.f32 %v1162, %v1287
        %v1323 = vadd.f32 %v1163, %v1289
        %v1324 = vadd.f32 %v1164, %v1291
        %v1325 = vadd.f32 %v1165, %v1293
        %1326 = vst.msk [vmem:[#allocation2] sm:$0xff] %vm273, %v1310
        %1327 = vst.msk [vmem:[#allocation2 + $0x8] sm:$0xff] %vm273, %v1311
        %1328 = vst.msk [vmem:[#allocation2 + $0x10] sm:$0xff] %vm273, %v1312
        %1329 = vst.msk [vmem:[#allocation2 + $0x18] sm:$0xff] %vm273, %v1313
        %1330 = vst.msk [vmem:[#allocation2 + $0x20] sm:$0xff] %vm273, %v1314
        %1331 = vst.msk [vmem:[#allocation2 + $0x28] sm:$0xff] %vm273, %v1315
        %1332 = vst.msk [vmem:[#allocation2 + $0x30] sm:$0xff] %vm273, %v1316
        %1333 = vst.msk [vmem:[#allocation2 + $0x38] sm:$0xff] %vm273, %v1317
        %1334 = vst.msk [vmem:[#allocation2 + $0x40] sm:$0xff] %vm273, %v1318
        %1335 = vst.msk [vmem:[#allocation2 + $0x48] sm:$0xff] %vm273, %v1319
        %1336 = vst.msk [vmem:[#allocation2 + $0x50] sm:$0xff] %vm273, %v1320
        %1337 = vst.msk [vmem:[#allocation2 + $0x58] sm:$0xff] %vm273, %v1321
        %1338 = vst.msk [vmem:[#allocation2 + $0x60] sm:$0xff] %vm273, %v1322
        %1339 = vst.msk [vmem:[#allocation2 + $0x68] sm:$0xff] %vm273, %v1323
        %1340 = vst.msk [vmem:[#allocation2 + $0x70] sm:$0xff] %vm273, %v1324
        %1341 = vst.msk [vmem:[#allocation2 + $0x78] sm:$0xff] %vm273, %v1325
        %v1342 = vld [vmem:[%s1053 + $0x2] sm:$0xff]
        %v1343 = vld [vmem:[%s1053 + $0xa] sm:$0xff]
        %v1344 = vld [vmem:[%s1053 + $0x1a] sm:$0xff]
        %v1345 = vld [vmem:[%s1053 + $0x22] sm:$0xff]
        %v1346 = vld [vmem:[%s1053 + $0x32] sm:$0xff]
        %v1347 = vld [vmem:[%s1053 + $0x3a] sm:$0xff]
        %v1348 = vld [vmem:[%s1053 + $0x4a] sm:$0xff]
        %v1349 = vld [vmem:[%s1053 + $0x52] sm:$0xff]
        %v1350 = vld [vmem:[%s1053 + $0x62] sm:$0xff]
        %v1351 = vld [vmem:[%s1053 + $0x6a] sm:$0xff]
        %v1352 = vld [vmem:[%s1053 + $0x7a] sm:$0xff]
        %v1353 = vld [vmem:[%s1053 + $0x82] sm:$0xff]
        %v1354 = vld [vmem:[%s1053 + $0x92] sm:$0xff]
        %v1355 = vld [vmem:[%s1053 + $0x9a] sm:$0xff]
        %v1356 = vld [vmem:[%s1053 + $0xaa] sm:$0xff]
        %v1357 = vld [vmem:[%s1053 + $0xb2] sm:$0xff]
        %v1358 = vld [vmem:[#allocation2] sm:$0xff]
        %v1359 = vld [vmem:[#allocation2 + $0x8] sm:$0xff]
        %v1360 = vld [vmem:[#allocation2 + $0x10] sm:$0xff]
        %v1361 = vld [vmem:[#allocation2 + $0x18] sm:$0xff]
        %v1362 = vld [vmem:[#allocation2 + $0x20] sm:$0xff]
        %v1363 = vld [vmem:[#allocation2 + $0x28] sm:$0xff]
        %v1364 = vld [vmem:[#allocation2 + $0x30] sm:$0xff]
        %v1365 = vld [vmem:[#allocation2 + $0x38] sm:$0xff]
        %v1366 = vld [vmem:[#allocation2 + $0x40] sm:$0xff]
        %v1367 = vld [vmem:[#allocation2 + $0x48] sm:$0xff]
        %v1368 = vld [vmem:[#allocation2 + $0x50] sm:$0xff]
        %v1369 = vld [vmem:[#allocation2 + $0x58] sm:$0xff]
        %v1370 = vld [vmem:[#allocation2 + $0x60] sm:$0xff]
        %v1371 = vld [vmem:[#allocation2 + $0x68] sm:$0xff]
        %v1372 = vld [vmem:[#allocation2 + $0x70] sm:$0xff]
        %v1373 = vld [vmem:[#allocation2 + $0x78] sm:$0xff]
        %v1374 = vmul.f32 %v638, %v1342
        %v1375 = vmul.f32 %v644, %v1343
        %v1376 = vmul.f32 %v650, %v1344
        %v1377 = vmul.f32 %v656, %v1345
        %v1378 = vmul.f32 %v662, %v1346
        %v1379 = vmul.f32 %v668, %v1347
        %v1380 = vmul.f32 %v674, %v1348
        %v1381 = vmul.f32 %v680, %v1349
        %v1382 = vmul.f32 %v686, %v1350
        %v1383 = vmul.f32 %v692, %v1351
        %v1384 = vmul.f32 %v698, %v1352
        %v1385 = vmul.f32 %v704, %v1353
        %v1386 = vmul.f32 %v710, %v1354
        %v1387 = vmul.f32 %v716, %v1355
        %v1388 = vmul.f32 %v722, %v1356
        %v1389 = vmul.f32 %v728, %v1357
        %v1390 = vadd.f32 %v1358, %v1374
        %v1391 = vadd.f32 %v1359, %v1375
        %v1392 = vadd.f32 %v1360, %v1376
        %v1393 = vadd.f32 %v1361, %v1377
        %v1394 = vadd.f32 %v1362, %v1378
        %v1395 = vadd.f32 %v1363, %v1379
        %v1396 = vadd.f32 %v1364, %v1380
        %v1397 = vadd.f32 %v1365, %v1381
        %v1398 = vadd.f32 %v1366, %v1382
        %v1399 = vadd.f32 %v1367, %v1383
        %v1400 = vadd.f32 %v1368, %v1384
        %v1401 = vadd.f32 %v1369, %v1385
        %v1402 = vadd.f32 %v1370, %v1386
        %v1403 = vadd.f32 %v1371, %v1387
        %v1404 = vadd.f32 %v1372, %v1388
        %v1405 = vadd.f32 %v1373, %v1389
        %1406 = vst.msk [vmem:[#allocation2] sm:$0xff] %vm273, %v1390
        %1407 = vst.msk [vmem:[#allocation2 + $0x8] sm:$0xff] %vm273, %v1391
        %1408 = vst.msk [vmem:[#allocation2 + $0x10] sm:$0xff] %vm273, %v1392
        %1409 = vst.msk [vmem:[#allocation2 + $0x18] sm:$0xff] %vm273, %v1393
        %1410 = vst.msk [vmem:[#allocation2 + $0x20] sm:$0xff] %vm273, %v1394
        %1411 = vst.msk [vmem:[#allocation2 + $0x28] sm:$0xff] %vm273, %v1395
        %1412 = vst.msk [vmem:[#allocation2 + $0x30] sm:$0xff] %vm273, %v1396
        %1413 = vst.msk [vmem:[#allocation2 + $0x38] sm:$0xff] %vm273, %v1397
        %1414 = vst.msk [vmem:[#allocation2 + $0x40] sm:$0xff] %vm273, %v1398
        %1415 = vst.msk [vmem:[#allocation2 + $0x48] sm:$0xff] %vm273, %v1399
        %1416 = vst.msk [vmem:[#allocation2 + $0x50] sm:$0xff] %vm273, %v1400
        %1417 = vst.msk [vmem:[#allocation2 + $0x58] sm:$0xff] %vm273, %v1401
        %1418 = vst.msk [vmem:[#allocation2 + $0x60] sm:$0xff] %vm273, %v1402
        %1419 = vst.msk [vmem:[#allocation2 + $0x68] sm:$0xff] %vm273, %v1403
        %1420 = vst.msk [vmem:[#allocation2 + $0x70] sm:$0xff] %vm273, %v1404
        %1421 = vst.msk [vmem:[#allocation2 + $0x78] sm:$0xff] %vm273, %v1405
        %v1422 = vld [vmem:[%s241] sm:$0xff]
        %v1423 = vld [vmem:[%s241 + $0x8] sm:$0xff]
        %v1424 = vld [vmem:[%s241 + $0x18] sm:$0xff]
        %v1425 = vld [vmem:[%s241 + $0x20] sm:$0xff]
        %v1426 = vld [vmem:[%s241 + $0x30] sm:$0xff]
        %v1427 = vld [vmem:[%s241 + $0x38] sm:$0xff]
        %v1428 = vld [vmem:[%s241 + $0x48] sm:$0xff]
        %v1429 = vld [vmem:[%s241 + $0x50] sm:$0xff]
        %v1430 = vld [vmem:[%s241 + $0x60] sm:$0xff]
        %v1431 = vld [vmem:[%s241 + $0x68] sm:$0xff]
        %v1432 = vld [vmem:[%s241 + $0x78] sm:$0xff]
        %v1433 = vld [vmem:[%s241 + $0x80] sm:$0xff]
        %v1434 = vld [vmem:[%s241 + $0x90] sm:$0xff]
        %v1435 = vld [vmem:[%s241 + $0x98] sm:$0xff]
        %v1436 = vld [vmem:[%s241 + $0xa8] sm:$0xff]
        %v1437 = vld [vmem:[%s241 + $0xb0] sm:$0xff]
        %v1438 = vld [vmem:[#allocation2] sm:$0xff]
        %v1439 = vld [vmem:[#allocation2 + $0x8] sm:$0xff]
        %v1440 = vld [vmem:[#allocation2 + $0x10] sm:$0xff]
        %v1441 = vld [vmem:[#allocation2 + $0x18] sm:$0xff]
        %v1442 = vld [vmem:[#allocation2 + $0x20] sm:$0xff]
        %v1443 = vld [vmem:[#allocation2 + $0x28] sm:$0xff]
        %v1444 = vld [vmem:[#allocation2 + $0x30] sm:$0xff]
        %v1445 = vld [vmem:[#allocation2 + $0x38] sm:$0xff]
        %v1446 = vld [vmem:[#allocation2 + $0x40] sm:$0xff]
        %v1447 = vld [vmem:[#allocation2 + $0x48] sm:$0xff]
        %v1448 = vld [vmem:[#allocation2 + $0x50] sm:$0xff]
        %v1449 = vld [vmem:[#allocation2 + $0x58] sm:$0xff]
        %v1450 = vld [vmem:[#allocation2 + $0x60] sm:$0xff]
        %v1451 = vld [vmem:[#allocation2 + $0x68] sm:$0xff]
        %v1452 = vld [vmem:[#allocation2 + $0x70] sm:$0xff]
        %v1453 = vld [vmem:[#allocation2 + $0x78] sm:$0xff]
        %1470 = vrot.lane.b32.xlu0 %v1422, 64
        %v1471 = vpop.permute.xlu0 %1470
        %1472 = vrot.lane.b32.xlu0 %v1423, 64
        %v1473 = vpop.permute.xlu0 %1472
        %1474 = vrot.lane.b32.xlu0 %v1424, 64
        %v1475 = vpop.permute.xlu0 %1474
        %1476 = vrot.lane.b32.xlu0 %v1425, 64
        %v1477 = vpop.permute.xlu0 %1476
        %1478 = vrot.lane.b32.xlu0 %v1426, 64
        %v1479 = vpop.permute.xlu0 %1478
        %1480 = vrot.lane.b32.xlu0 %v1427, 64
        %v1481 = vpop.permute.xlu0 %1480
        %1482 = vrot.lane.b32.xlu0 %v1428, 64
        %v1483 = vpop.permute.xlu0 %1482
        %1484 = vrot.lane.b32.xlu0 %v1429, 64
        %v1485 = vpop.permute.xlu0 %1484
        %1486 = vrot.lane.b32.xlu0 %v1430, 64
        %v1487 = vpop.permute.xlu0 %1486
        %1488 = vrot.lane.b32.xlu0 %v1431, 64
        %v1489 = vpop.permute.xlu0 %1488
        %1490 = vrot.lane.b32.xlu0 %v1432, 64
        %v1491 = vpop.permute.xlu0 %1490
        %1492 = vrot.lane.b32.xlu0 %v1433, 64
        %v1493 = vpop.permute.xlu0 %1492
        %1494 = vrot.lane.b32.xlu0 %v1434, 64
        %v1495 = vpop.permute.xlu0 %1494
        %1496 = vrot.lane.b32.xlu0 %v1435, 64
        %v1497 = vpop.permute.xlu0 %1496
        %1498 = vrot.lane.b32.xlu0 %v1436, 64
        %v1499 = vpop.permute.xlu0 %1498
        %1500 = vrot.lane.b32.xlu0 %v1437, 64
        %v1501 = vpop.permute.xlu0 %1500
        %v1518 = vmul.f32 %v638, %v1471
        %v1519 = vmul.f32 %v644, %v1473
        %v1520 = vmul.f32 %v650, %v1475
        %v1521 = vmul.f32 %v656, %v1477
        %v1522 = vmul.f32 %v662, %v1479
        %v1523 = vmul.f32 %v668, %v1481
        %v1524 = vmul.f32 %v674, %v1483
        %v1525 = vmul.f32 %v680, %v1485
        %v1526 = vmul.f32 %v686, %v1487
        %v1527 = vmul.f32 %v692, %v1489
        %v1528 = vmul.f32 %v698, %v1491
        %v1529 = vmul.f32 %v704, %v1493
        %v1530 = vmul.f32 %v710, %v1495
        %v1531 = vmul.f32 %v716, %v1497
        %v1532 = vmul.f32 %v722, %v1499
        %v1533 = vmul.f32 %v728, %v1501
        %1550 = vrot.lane.b32.xlu0 %v1518, 64
        %v1551 = vpop.permute.xlu0 %1550
        %1552 = vrot.lane.b32.xlu0 %v1519, 64
        %v1553 = vpop.permute.xlu0 %1552
        %1554 = vrot.lane.b32.xlu0 %v1520, 64
        %v1555 = vpop.permute.xlu0 %1554
        %1556 = vrot.lane.b32.xlu0 %v1521, 64
        %v1557 = vpop.permute.xlu0 %1556
        %1558 = vrot.lane.b32.xlu0 %v1522, 64
        %v1559 = vpop.permute.xlu0 %1558
        %1560 = vrot.lane.b32.xlu0 %v1523, 64
        %v1561 = vpop.permute.xlu0 %1560
        %1562 = vrot.lane.b32.xlu0 %v1524, 64
        %v1563 = vpop.permute.xlu0 %1562
        %1564 = vrot.lane.b32.xlu0 %v1525, 64
        %v1565 = vpop.permute.xlu0 %1564
        %1566 = vrot.lane.b32.xlu0 %v1526, 64
        %v1567 = vpop.permute.xlu0 %1566
        %1568 = vrot.lane.b32.xlu0 %v1527, 64
        %v1569 = vpop.permute.xlu0 %1568
        %1570 = vrot.lane.b32.xlu0 %v1528, 64
        %v1571 = vpop.permute.xlu0 %1570
        %1572 = vrot.lane.b32.xlu0 %v1529, 64
        %v1573 = vpop.permute.xlu0 %1572
        %1574 = vrot.lane.b32.xlu0 %v1530, 64
        %v1575 = vpop.permute.xlu0 %1574
        %1576 = vrot.lane.b32.xlu0 %v1531, 64
        %v1577 = vpop.permute.xlu0 %1576
        %1578 = vrot.lane.b32.xlu0 %v1532, 64
        %v1579 = vpop.permute.xlu0 %1578
        %1580 = vrot.lane.b32.xlu0 %v1533, 64
        %v1581 = vpop.permute.xlu0 %1580
        %v1598 = vadd.f32 %v1438, %v1551
        %v1599 = vadd.f32 %v1439, %v1553
        %v1600 = vadd.f32 %v1440, %v1555
        %v1601 = vadd.f32 %v1441, %v1557
        %v1602 = vadd.f32 %v1442, %v1559
        %v1603 = vadd.f32 %v1443, %v1561
        %v1604 = vadd.f32 %v1444, %v1563
        %v1605 = vadd.f32 %v1445, %v1565
        %v1606 = vadd.f32 %v1446, %v1567
        %v1607 = vadd.f32 %v1447, %v1569
        %v1608 = vadd.f32 %v1448, %v1571
        %v1609 = vadd.f32 %v1449, %v1573
        %v1610 = vadd.f32 %v1450, %v1575
        %v1611 = vadd.f32 %v1451, %v1577
        %v1612 = vadd.f32 %v1452, %v1579
        %v1613 = vadd.f32 %v1453, %v1581
        %1614 = vst.msk [vmem:[#allocation2] sm:$0xff] %vm273, %v1598
        %1615 = vst.msk [vmem:[#allocation2 + $0x8] sm:$0xff] %vm273, %v1599
        %1616 = vst.msk [vmem:[#allocation2 + $0x10] sm:$0xff] %vm273, %v1600
        %1617 = vst.msk [vmem:[#allocation2 + $0x18] sm:$0xff] %vm273, %v1601
        %1618 = vst.msk [vmem:[#allocation2 + $0x20] sm:$0xff] %vm273, %v1602
        %1619 = vst.msk [vmem:[#allocation2 + $0x28] sm:$0xff] %vm273, %v1603
        %1620 = vst.msk [vmem:[#allocation2 + $0x30] sm:$0xff] %vm273, %v1604
        %1621 = vst.msk [vmem:[#allocation2 + $0x38] sm:$0xff] %vm273, %v1605
        %1622 = vst.msk [vmem:[#allocation2 + $0x40] sm:$0xff] %vm273, %v1606
        %1623 = vst.msk [vmem:[#allocation2 + $0x48] sm:$0xff] %vm273, %v1607
        %1624 = vst.msk [vmem:[#allocation2 + $0x50] sm:$0xff] %vm273, %v1608
        %1625 = vst.msk [vmem:[#allocation2 + $0x58] sm:$0xff] %vm273, %v1609
        %1626 = vst.msk [vmem:[#allocation2 + $0x60] sm:$0xff] %vm273, %v1610
        %1627 = vst.msk [vmem:[#allocation2 + $0x68] sm:$0xff] %vm273, %v1611
        %1628 = vst.msk [vmem:[#allocation2 + $0x70] sm:$0xff] %vm273, %v1612
        %1629 = vst.msk [vmem:[#allocation2 + $0x78] sm:$0xff] %vm273, %v1613
        %v1630 = vld [vmem:[%s241 + $0x1] sm:$0xff]
        %v1631 = vld [vmem:[%s241 + $0x9] sm:$0xff]
        %v1632 = vld [vmem:[%s241 + $0x19] sm:$0xff]
        %v1633 = vld [vmem:[%s241 + $0x21] sm:$0xff]
        %v1634 = vld [vmem:[%s241 + $0x31] sm:$0xff]
        %v1635 = vld [vmem:[%s241 + $0x39] sm:$0xff]
        %v1636 = vld [vmem:[%s241 + $0x49] sm:$0xff]
        %v1637 = vld [vmem:[%s241 + $0x51] sm:$0xff]
        %v1638 = vld [vmem:[%s241 + $0x61] sm:$0xff]
        %v1639 = vld [vmem:[%s241 + $0x69] sm:$0xff]
        %v1640 = vld [vmem:[%s241 + $0x79] sm:$0xff]
        %v1641 = vld [vmem:[%s241 + $0x81] sm:$0xff]
        %v1642 = vld [vmem:[%s241 + $0x91] sm:$0xff]
        %v1643 = vld [vmem:[%s241 + $0x99] sm:$0xff]
        %v1644 = vld [vmem:[%s241 + $0xa9] sm:$0xff]
        %v1645 = vld [vmem:[%s241 + $0xb1] sm:$0xff]
        %v1646 = vld [vmem:[#allocation2] sm:$0xff]
        %v1647 = vld [vmem:[#allocation2 + $0x8] sm:$0xff]
        %v1648 = vld [vmem:[#allocation2 + $0x10] sm:$0xff]
        %v1649 = vld [vmem:[#allocation2 + $0x18] sm:$0xff]
        %v1650 = vld [vmem:[#allocation2 + $0x20] sm:$0xff]
        %v1651 = vld [vmem:[#allocation2 + $0x28] sm:$0xff]
        %v1652 = vld [vmem:[#allocation2 + $0x30] sm:$0xff]
        %v1653 = vld [vmem:[#allocation2 + $0x38] sm:$0xff]
        %v1654 = vld [vmem:[#allocation2 + $0x40] sm:$0xff]
        %v1655 = vld [vmem:[#allocation2 + $0x48] sm:$0xff]
        %v1656 = vld [vmem:[#allocation2 + $0x50] sm:$0xff]
        %v1657 = vld [vmem:[#allocation2 + $0x58] sm:$0xff]
        %v1658 = vld [vmem:[#allocation2 + $0x60] sm:$0xff]
        %v1659 = vld [vmem:[#allocation2 + $0x68] sm:$0xff]
        %v1660 = vld [vmem:[#allocation2 + $0x70] sm:$0xff]
        %v1661 = vld [vmem:[#allocation2 + $0x78] sm:$0xff]
        %v1662 = vmul.f32 %v797, %v1630
        %v1663 = vmul.f32 %v803, %v1631
        %v1664 = vmul.f32 %v809, %v1632
        %v1665 = vmul.f32 %v815, %v1633
        %v1666 = vmul.f32 %v821, %v1634
        %v1667 = vmul.f32 %v827, %v1635
        %v1668 = vmul.f32 %v833, %v1636
        %v1669 = vmul.f32 %v839, %v1637
        %v1670 = vmul.f32 %v845, %v1638
        %v1671 = vmul.f32 %v851, %v1639
        %v1672 = vmul.f32 %v857, %v1640
        %v1673 = vmul.f32 %v863, %v1641
        %v1674 = vmul.f32 %v869, %v1642
        %v1675 = vmul.f32 %v875, %v1643
        %v1676 = vmul.f32 %v881, %v1644
        %v1677 = vmul.f32 %v887, %v1645
        %v1678 = vadd.f32 %v1646, %v1662
        %v1679 = vadd.f32 %v1647, %v1663
        %v1680 = vadd.f32 %v1648, %v1664
        %v1681 = vadd.f32 %v1649, %v1665
        %v1682 = vadd.f32 %v1650, %v1666
        %v1683 = vadd.f32 %v1651, %v1667
        %v1684 = vadd.f32 %v1652, %v1668
        %v1685 = vadd.f32 %v1653, %v1669
        %v1686 = vadd.f32 %v1654, %v1670
        %v1687 = vadd.f32 %v1655, %v1671
        %v1688 = vadd.f32 %v1656, %v1672
        %v1689 = vadd.f32 %v1657, %v1673
        %v1690 = vadd.f32 %v1658, %v1674
        %v1691 = vadd.f32 %v1659, %v1675
        %v1692 = vadd.f32 %v1660, %v1676
        %v1693 = vadd.f32 %v1661, %v1677
        %1694 = vst.msk [vmem:[#allocation2] sm:$0xff] %vm273, %v1678
        %1695 = vst.msk [vmem:[#allocation2 + $0x8] sm:$0xff] %vm273, %v1679
        %1696 = vst.msk [vmem:[#allocation2 + $0x10] sm:$0xff] %vm273, %v1680
        %1697 = vst.msk [vmem:[#allocation2 + $0x18] sm:$0xff] %vm273, %v1681
        %1698 = vst.msk [vmem:[#allocation2 + $0x20] sm:$0xff] %vm273, %v1682
        %1699 = vst.msk [vmem:[#allocation2 + $0x28] sm:$0xff] %vm273, %v1683
        %1700 = vst.msk [vmem:[#allocation2 + $0x30] sm:$0xff] %vm273, %v1684
        %1701 = vst.msk [vmem:[#allocation2 + $0x38] sm:$0xff] %vm273, %v1685
        %1702 = vst.msk [vmem:[#allocation2 + $0x40] sm:$0xff] %vm273, %v1686
        %1703 = vst.msk [vmem:[#allocation2 + $0x48] sm:$0xff] %vm273, %v1687
        %1704 = vst.msk [vmem:[#allocation2 + $0x50] sm:$0xff] %vm273, %v1688
        %1705 = vst.msk [vmem:[#allocation2 + $0x58] sm:$0xff] %vm273, %v1689
        %1706 = vst.msk [vmem:[#allocation2 + $0x60] sm:$0xff] %vm273, %v1690
        %1707 = vst.msk [vmem:[#allocation2 + $0x68] sm:$0xff] %vm273, %v1691
        %1708 = vst.msk [vmem:[#allocation2 + $0x70] sm:$0xff] %vm273, %v1692
        %1709 = vst.msk [vmem:[#allocation2 + $0x78] sm:$0xff] %vm273, %v1693
        %v1710 = vld [vmem:[%s241 + $0x2] sm:$0xff]
        %v1711 = vld [vmem:[%s241 + $0xa] sm:$0xff]
        %v1712 = vld [vmem:[%s241 + $0x1a] sm:$0xff]
        %v1713 = vld [vmem:[%s241 + $0x22] sm:$0xff]
        %v1714 = vld [vmem:[%s241 + $0x32] sm:$0xff]
        %v1715 = vld [vmem:[%s241 + $0x3a] sm:$0xff]
        %v1716 = vld [vmem:[%s241 + $0x4a] sm:$0xff]
        %v1717 = vld [vmem:[%s241 + $0x52] sm:$0xff]
        %v1718 = vld [vmem:[%s241 + $0x62] sm:$0xff]
        %v1719 = vld [vmem:[%s241 + $0x6a] sm:$0xff]
        %v1720 = vld [vmem:[%s241 + $0x7a] sm:$0xff]
        %v1721 = vld [vmem:[%s241 + $0x82] sm:$0xff]
        %v1722 = vld [vmem:[%s241 + $0x92] sm:$0xff]
        %v1723 = vld [vmem:[%s241 + $0x9a] sm:$0xff]
        %v1724 = vld [vmem:[%s241 + $0xaa] sm:$0xff]
        %v1725 = vld [vmem:[%s241 + $0xb2] sm:$0xff]
        %v1726 = vld [vmem:[#allocation2] sm:$0xff]
        %v1727 = vld [vmem:[#allocation2 + $0x8] sm:$0xff]
        %v1728 = vld [vmem:[#allocation2 + $0x10] sm:$0xff]
        %v1729 = vld [vmem:[#allocation2 + $0x18] sm:$0xff]
        %v1730 = vld [vmem:[#allocation2 + $0x20] sm:$0xff]
        %v1731 = vld [vmem:[#allocation2 + $0x28] sm:$0xff]
        %v1732 = vld [vmem:[#allocation2 + $0x30] sm:$0xff]
        %v1733 = vld [vmem:[#allocation2 + $0x38] sm:$0xff]
        %v1734 = vld [vmem:[#allocation2 + $0x40] sm:$0xff]
        %v1735 = vld [vmem:[#allocation2 + $0x48] sm:$0xff]
        %v1736 = vld [vmem:[#allocation2 + $0x50] sm:$0xff]
        %v1737 = vld [vmem:[#allocation2 + $0x58] sm:$0xff]
        %v1738 = vld [vmem:[#allocation2 + $0x60] sm:$0xff]
        %v1739 = vld [vmem:[#allocation2 + $0x68] sm:$0xff]
        %v1740 = vld [vmem:[#allocation2 + $0x70] sm:$0xff]
        %v1741 = vld [vmem:[#allocation2 + $0x78] sm:$0xff]
        %1758 = vrot.lane.b32.xlu0 %v1710, 64
        %v1759 = vpop.permute.xlu0 %1758
        %1760 = vrot.lane.b32.xlu0 %v1711, 64
        %v1761 = vpop.permute.xlu0 %1760
        %1762 = vrot.lane.b32.xlu0 %v1712, 64
        %v1763 = vpop.permute.xlu0 %1762
        %1764 = vrot.lane.b32.xlu0 %v1713, 64
        %v1765 = vpop.permute.xlu0 %1764
        %1766 = vrot.lane.b32.xlu0 %v1714, 64
        %v1767 = vpop.permute.xlu0 %1766
        %1768 = vrot.lane.b32.xlu0 %v1715, 64
        %v1769 = vpop.permute.xlu0 %1768
        %1770 = vrot.lane.b32.xlu0 %v1716, 64
        %v1771 = vpop.permute.xlu0 %1770
        %1772 = vrot.lane.b32.xlu0 %v1717, 64
        %v1773 = vpop.permute.xlu0 %1772
        %1774 = vrot.lane.b32.xlu0 %v1718, 64
        %v1775 = vpop.permute.xlu0 %1774
        %1776 = vrot.lane.b32.xlu0 %v1719, 64
        %v1777 = vpop.permute.xlu0 %1776
        %1778 = vrot.lane.b32.xlu0 %v1720, 64
        %v1779 = vpop.permute.xlu0 %1778
        %1780 = vrot.lane.b32.xlu0 %v1721, 64
        %v1781 = vpop.permute.xlu0 %1780
        %1782 = vrot.lane.b32.xlu0 %v1722, 64
        %v1783 = vpop.permute.xlu0 %1782
        %1784 = vrot.lane.b32.xlu0 %v1723, 64
        %v1785 = vpop.permute.xlu0 %1784
        %1786 = vrot.lane.b32.xlu0 %v1724, 64
        %v1787 = vpop.permute.xlu0 %1786
        %1788 = vrot.lane.b32.xlu0 %v1725, 64
        %v1789 = vpop.permute.xlu0 %1788
        %v1806 = vmul.f32 %v797, %v1759
        %v1807 = vmul.f32 %v803, %v1761
        %v1808 = vmul.f32 %v809, %v1763
        %v1809 = vmul.f32 %v815, %v1765
        %v1810 = vmul.f32 %v821, %v1767
        %v1811 = vmul.f32 %v827, %v1769
        %v1812 = vmul.f32 %v833, %v1771
        %v1813 = vmul.f32 %v839, %v1773
        %v1814 = vmul.f32 %v845, %v1775
        %v1815 = vmul.f32 %v851, %v1777
        %v1816 = vmul.f32 %v857, %v1779
        %v1817 = vmul.f32 %v863, %v1781
        %v1818 = vmul.f32 %v869, %v1783
        %v1819 = vmul.f32 %v875, %v1785
        %v1820 = vmul.f32 %v881, %v1787
        %v1821 = vmul.f32 %v887, %v1789
        %1838 = vrot.lane.b32.xlu0 %v1806, 64
        %v1839 = vpop.permute.xlu0 %1838
        %1840 = vrot.lane.b32.xlu0 %v1807, 64
        %v1841 = vpop.permute.xlu0 %1840
        %1842 = vrot.lane.b32.xlu0 %v1808, 64
        %v1843 = vpop.permute.xlu0 %1842
        %1844 = vrot.lane.b32.xlu0 %v1809, 64
        %v1845 = vpop.permute.xlu0 %1844
        %1846 = vrot.lane.b32.xlu0 %v1810, 64
        %v1847 = vpop.permute.xlu0 %1846
        %1848 = vrot.lane.b32.xlu0 %v1811, 64
        %v1849 = vpop.permute.xlu0 %1848
        %1850 = vrot.lane.b32.xlu0 %v1812, 64
        %v1851 = vpop.permute.xlu0 %1850
        %1852 = vrot.lane.b32.xlu0 %v1813, 64
        %v1853 = vpop.permute.xlu0 %1852
        %1854 = vrot.lane.b32.xlu0 %v1814, 64
        %v1855 = vpop.permute.xlu0 %1854
        %1856 = vrot.lane.b32.xlu0 %v1815, 64
        %v1857 = vpop.permute.xlu0 %1856
        %1858 = vrot.lane.b32.xlu0 %v1816, 64
        %v1859 = vpop.permute.xlu0 %1858
        %1860 = vrot.lane.b32.xlu0 %v1817, 64
        %v1861 = vpop.permute.xlu0 %1860
        %1862 = vrot.lane.b32.xlu0 %v1818, 64
        %v1863 = vpop.permute.xlu0 %1862
        %1864 = vrot.lane.b32.xlu0 %v1819, 64
        %v1865 = vpop.permute.xlu0 %1864
        %1866 = vrot.lane.b32.xlu0 %v1820, 64
        %v1867 = vpop.permute.xlu0 %1866
        %1868 = vrot.lane.b32.xlu0 %v1821, 64
        %v1869 = vpop.permute.xlu0 %1868
        %v1886 = vadd.f32 %v1726, %v1839
        %v1887 = vadd.f32 %v1727, %v1841
        %v1888 = vadd.f32 %v1728, %v1843
        %v1889 = vadd.f32 %v1729, %v1845
        %v1890 = vadd.f32 %v1730, %v1847
        %v1891 = vadd.f32 %v1731, %v1849
        %v1892 = vadd.f32 %v1732, %v1851
        %v1893 = vadd.f32 %v1733, %v1853
        %v1894 = vadd.f32 %v1734, %v1855
        %v1895 = vadd.f32 %v1735, %v1857
        %v1896 = vadd.f32 %v1736, %v1859
        %v1897 = vadd.f32 %v1737, %v1861
        %v1898 = vadd.f32 %v1738, %v1863
        %v1899 = vadd.f32 %v1739, %v1865
        %v1900 = vadd.f32 %v1740, %v1867
        %v1901 = vadd.f32 %v1741, %v1869
        %1902 = vst.msk [vmem:[#allocation2] sm:$0xff] %vm273, %v1886
        %1903 = vst.msk [vmem:[#allocation2 + $0x8] sm:$0xff] %vm273, %v1887
        %1904 = vst.msk [vmem:[#allocation2 + $0x10] sm:$0xff] %vm273, %v1888
        %1905 = vst.msk [vmem:[#allocation2 + $0x18] sm:$0xff] %vm273, %v1889
        %1906 = vst.msk [vmem:[#allocation2 + $0x20] sm:$0xff] %vm273, %v1890
        %1907 = vst.msk [vmem:[#allocation2 + $0x28] sm:$0xff] %vm273, %v1891
        %1908 = vst.msk [vmem:[#allocation2 + $0x30] sm:$0xff] %vm273, %v1892
        %1909 = vst.msk [vmem:[#allocation2 + $0x38] sm:$0xff] %vm273, %v1893
        %1910 = vst.msk [vmem:[#allocation2 + $0x40] sm:$0xff] %vm273, %v1894
        %1911 = vst.msk [vmem:[#allocation2 + $0x48] sm:$0xff] %vm273, %v1895
        %1912 = vst.msk [vmem:[#allocation2 + $0x50] sm:$0xff] %vm273, %v1896
        %1913 = vst.msk [vmem:[#allocation2 + $0x58] sm:$0xff] %vm273, %v1897
        %1914 = vst.msk [vmem:[#allocation2 + $0x60] sm:$0xff] %vm273, %v1898
        %1915 = vst.msk [vmem:[#allocation2 + $0x68] sm:$0xff] %vm273, %v1899
        %1916 = vst.msk [vmem:[#allocation2 + $0x70] sm:$0xff] %vm273, %v1900
        %1917 = vst.msk [vmem:[#allocation2 + $0x78] sm:$0xff] %vm273, %v1901
        %s1918 = sadd.s32 %s238, 2
        %s1919 = smul.u32 %s1918, 24
        %s1920 = scalar_lea.vmem %s236, %s1919
        %v1921 = vld [vmem:[%s1920] sm:$0xff]
        %v1922 = vld [vmem:[%s1920 + $0x8] sm:$0xff]
        %v1923 = vld [vmem:[%s1920 + $0x18] sm:$0xff]
        %v1924 = vld [vmem:[%s1920 + $0x20] sm:$0xff]
        %v1925 = vld [vmem:[%s1920 + $0x30] sm:$0xff]
        %v1926 = vld [vmem:[%s1920 + $0x38] sm:$0xff]
        %v1927 = vld [vmem:[%s1920 + $0x48] sm:$0xff]
        %v1928 = vld [vmem:[%s1920 + $0x50] sm:$0xff]
        %v1929 = vld [vmem:[%s1920 + $0x60] sm:$0xff]
        %v1930 = vld [vmem:[%s1920 + $0x68] sm:$0xff]
        %v1931 = vld [vmem:[%s1920 + $0x78] sm:$0xff]
        %v1932 = vld [vmem:[%s1920 + $0x80] sm:$0xff]
        %v1933 = vld [vmem:[%s1920 + $0x90] sm:$0xff]
        %v1934 = vld [vmem:[%s1920 + $0x98] sm:$0xff]
        %v1935 = vld [vmem:[%s1920 + $0xa8] sm:$0xff]
        %v1936 = vld [vmem:[%s1920 + $0xb0] sm:$0xff]
        %v1937 = vld [vmem:[#allocation2] sm:$0xff]
        %v1938 = vld [vmem:[#allocation2 + $0x8] sm:$0xff]
        %v1939 = vld [vmem:[#allocation2 + $0x10] sm:$0xff]
        %v1940 = vld [vmem:[#allocation2 + $0x18] sm:$0xff]
        %v1941 = vld [vmem:[#allocation2 + $0x20] sm:$0xff]
        %v1942 = vld [vmem:[#allocation2 + $0x28] sm:$0xff]
        %v1943 = vld [vmem:[#allocation2 + $0x30] sm:$0xff]
        %v1944 = vld [vmem:[#allocation2 + $0x38] sm:$0xff]
        %v1945 = vld [vmem:[#allocation2 + $0x40] sm:$0xff]
        %v1946 = vld [vmem:[#allocation2 + $0x48] sm:$0xff]
        %v1947 = vld [vmem:[#allocation2 + $0x50] sm:$0xff]
        %v1948 = vld [vmem:[#allocation2 + $0x58] sm:$0xff]
        %v1949 = vld [vmem:[#allocation2 + $0x60] sm:$0xff]
        %v1950 = vld [vmem:[#allocation2 + $0x68] sm:$0xff]
        %v1951 = vld [vmem:[#allocation2 + $0x70] sm:$0xff]
        %v1952 = vld [vmem:[#allocation2 + $0x78] sm:$0xff]
        %v1953 = vmul.f32 %v799, %v1921
        %v1954 = vmul.f32 %v805, %v1922
        %v1955 = vmul.f32 %v811, %v1923
        %v1956 = vmul.f32 %v817, %v1924
        %v1957 = vmul.f32 %v823, %v1925
        %v1958 = vmul.f32 %v829, %v1926
        %v1959 = vmul.f32 %v835, %v1927
        %v1960 = vmul.f32 %v841, %v1928
        %v1961 = vmul.f32 %v847, %v1929
        %v1962 = vmul.f32 %v853, %v1930
        %v1963 = vmul.f32 %v859, %v1931
        %v1964 = vmul.f32 %v865, %v1932
        %v1965 = vmul.f32 %v871, %v1933
        %v1966 = vmul.f32 %v877, %v1934
        %v1967 = vmul.f32 %v883, %v1935
        %v1968 = vmul.f32 %v889, %v1936
        %v1969 = vadd.f32 %v1937, %v1953
        %v1970 = vadd.f32 %v1938, %v1954
        %v1971 = vadd.f32 %v1939, %v1955
        %v1972 = vadd.f32 %v1940, %v1956
        %v1973 = vadd.f32 %v1941, %v1957
        %v1974 = vadd.f32 %v1942, %v1958
        %v1975 = vadd.f32 %v1943, %v1959
        %v1976 = vadd.f32 %v1944, %v1960
        %v1977 = vadd.f32 %v1945, %v1961
        %v1978 = vadd.f32 %v1946, %v1962
        %v1979 = vadd.f32 %v1947, %v1963
        %v1980 = vadd.f32 %v1948, %v1964
        %v1981 = vadd.f32 %v1949, %v1965
        %v1982 = vadd.f32 %v1950, %v1966
        %v1983 = vadd.f32 %v1951, %v1967
        %v1984 = vadd.f32 %v1952, %v1968
        %1985 = vst.msk [vmem:[#allocation2] sm:$0xff] %vm273, %v1969
        %1986 = vst.msk [vmem:[#allocation2 + $0x8] sm:$0xff] %vm273, %v1970
        %1987 = vst.msk [vmem:[#allocation2 + $0x10] sm:$0xff] %vm273, %v1971
        %1988 = vst.msk [vmem:[#allocation2 + $0x18] sm:$0xff] %vm273, %v1972
        %1989 = vst.msk [vmem:[#allocation2 + $0x20] sm:$0xff] %vm273, %v1973
        %1990 = vst.msk [vmem:[#allocation2 + $0x28] sm:$0xff] %vm273, %v1974
        %1991 = vst.msk [vmem:[#allocation2 + $0x30] sm:$0xff] %vm273, %v1975
        %1992 = vst.msk [vmem:[#allocation2 + $0x38] sm:$0xff] %vm273, %v1976
        %1993 = vst.msk [vmem:[#allocation2 + $0x40] sm:$0xff] %vm273, %v1977
        %1994 = vst.msk [vmem:[#allocation2 + $0x48] sm:$0xff] %vm273, %v1978
        %1995 = vst.msk [vmem:[#allocation2 + $0x50] sm:$0xff] %vm273, %v1979
        %1996 = vst.msk [vmem:[#allocation2 + $0x58] sm:$0xff] %vm273, %v1980
        %1997 = vst.msk [vmem:[#allocation2 + $0x60] sm:$0xff] %vm273, %v1981
        %1998 = vst.msk [vmem:[#allocation2 + $0x68] sm:$0xff] %vm273, %v1982
        %1999 = vst.msk [vmem:[#allocation2 + $0x70] sm:$0xff] %vm273, %v1983
        %2000 = vst.msk [vmem:[#allocation2 + $0x78] sm:$0xff] %vm273, %v1984
        %v2001 = vld [vmem:[%s1920 + $0x1] sm:$0xff]
        %v2002 = vld [vmem:[%s1920 + $0x9] sm:$0xff]
        %v2003 = vld [vmem:[%s1920 + $0x19] sm:$0xff]
        %v2004 = vld [vmem:[%s1920 + $0x21] sm:$0xff]
        %v2005 = vld [vmem:[%s1920 + $0x31] sm:$0xff]
        %v2006 = vld [vmem:[%s1920 + $0x39] sm:$0xff]
        %v2007 = vld [vmem:[%s1920 + $0x49] sm:$0xff]
        %v2008 = vld [vmem:[%s1920 + $0x51] sm:$0xff]
        %v2009 = vld [vmem:[%s1920 + $0x61] sm:$0xff]
        %v2010 = vld [vmem:[%s1920 + $0x69] sm:$0xff]
        %v2011 = vld [vmem:[%s1920 + $0x79] sm:$0xff]
        %v2012 = vld [vmem:[%s1920 + $0x81] sm:$0xff]
        %v2013 = vld [vmem:[%s1920 + $0x91] sm:$0xff]
        %v2014 = vld [vmem:[%s1920 + $0x99] sm:$0xff]
        %v2015 = vld [vmem:[%s1920 + $0xa9] sm:$0xff]
        %v2016 = vld [vmem:[%s1920 + $0xb1] sm:$0xff]
        %v2017 = vld [vmem:[#allocation2] sm:$0xff]
        %v2018 = vld [vmem:[#allocation2 + $0x8] sm:$0xff]
        %v2019 = vld [vmem:[#allocation2 + $0x10] sm:$0xff]
        %v2020 = vld [vmem:[#allocation2 + $0x18] sm:$0xff]
        %v2021 = vld [vmem:[#allocation2 + $0x20] sm:$0xff]
        %v2022 = vld [vmem:[#allocation2 + $0x28] sm:$0xff]
        %v2023 = vld [vmem:[#allocation2 + $0x30] sm:$0xff]
        %v2024 = vld [vmem:[#allocation2 + $0x38] sm:$0xff]
        %v2025 = vld [vmem:[#allocation2 + $0x40] sm:$0xff]
        %v2026 = vld [vmem:[#allocation2 + $0x48] sm:$0xff]
        %v2027 = vld [vmem:[#allocation2 + $0x50] sm:$0xff]
        %v2028 = vld [vmem:[#allocation2 + $0x58] sm:$0xff]
        %v2029 = vld [vmem:[#allocation2 + $0x60] sm:$0xff]
        %v2030 = vld [vmem:[#allocation2 + $0x68] sm:$0xff]
        %v2031 = vld [vmem:[#allocation2 + $0x70] sm:$0xff]
        %v2032 = vld [vmem:[#allocation2 + $0x78] sm:$0xff]
        %2049 = vrot.lane.b32.xlu0 %v2001, 64
        %v2050 = vpop.permute.xlu0 %2049
        %2051 = vrot.lane.b32.xlu0 %v2002, 64
        %v2052 = vpop.permute.xlu0 %2051
        %2053 = vrot.lane.b32.xlu0 %v2003, 64
        %v2054 = vpop.permute.xlu0 %2053
        %2055 = vrot.lane.b32.xlu0 %v2004, 64
        %v2056 = vpop.permute.xlu0 %2055
        %2057 = vrot.lane.b32.xlu0 %v2005, 64
        %v2058 = vpop.permute.xlu0 %2057
        %2059 = vrot.lane.b32.xlu0 %v2006, 64
        %v2060 = vpop.permute.xlu0 %2059
        %2061 = vrot.lane.b32.xlu0 %v2007, 64
        %v2062 = vpop.permute.xlu0 %2061
        %2063 = vrot.lane.b32.xlu0 %v2008, 64
        %v2064 = vpop.permute.xlu0 %2063
        %2065 = vrot.lane.b32.xlu0 %v2009, 64
        %v2066 = vpop.permute.xlu0 %2065
        %2067 = vrot.lane.b32.xlu0 %v2010, 64
        %v2068 = vpop.permute.xlu0 %2067
        %2069 = vrot.lane.b32.xlu0 %v2011, 64
        %v2070 = vpop.permute.xlu0 %2069
        %2071 = vrot.lane.b32.xlu0 %v2012, 64
        %v2072 = vpop.permute.xlu0 %2071
        %2073 = vrot.lane.b32.xlu0 %v2013, 64
        %v2074 = vpop.permute.xlu0 %2073
        %2075 = vrot.lane.b32.xlu0 %v2014, 64
        %v2076 = vpop.permute.xlu0 %2075
        %2077 = vrot.lane.b32.xlu0 %v2015, 64
        %v2078 = vpop.permute.xlu0 %2077
        %2079 = vrot.lane.b32.xlu0 %v2016, 64
        %v2080 = vpop.permute.xlu0 %2079
        %v2097 = vmul.f32 %v799, %v2050
        %v2098 = vmul.f32 %v805, %v2052
        %v2099 = vmul.f32 %v811, %v2054
        %v2100 = vmul.f32 %v817, %v2056
        %v2101 = vmul.f32 %v823, %v2058
        %v2102 = vmul.f32 %v829, %v2060
        %v2103 = vmul.f32 %v835, %v2062
        %v2104 = vmul.f32 %v841, %v2064
        %v2105 = vmul.f32 %v847, %v2066
        %v2106 = vmul.f32 %v853, %v2068
        %v2107 = vmul.f32 %v859, %v2070
        %v2108 = vmul.f32 %v865, %v2072
        %v2109 = vmul.f32 %v871, %v2074
        %v2110 = vmul.f32 %v877, %v2076
        %v2111 = vmul.f32 %v883, %v2078
        %v2112 = vmul.f32 %v889, %v2080
        %2129 = vrot.lane.b32.xlu0 %v2097, 64
        %v2130 = vpop.permute.xlu0 %2129
        %2131 = vrot.lane.b32.xlu0 %v2098, 64
        %v2132 = vpop.permute.xlu0 %2131
        %2133 = vrot.lane.b32.xlu0 %v2099, 64
        %v2134 = vpop.permute.xlu0 %2133
        %2135 = vrot.lane.b32.xlu0 %v2100, 64
        %v2136 = vpop.permute.xlu0 %2135
        %2137 = vrot.lane.b32.xlu0 %v2101, 64
        %v2138 = vpop.permute.xlu0 %2137
        %2139 = vrot.lane.b32.xlu0 %v2102, 64
        %v2140 = vpop.permute.xlu0 %2139
        %2141 = vrot.lane.b32.xlu0 %v2103, 64
        %v2142 = vpop.permute.xlu0 %2141
        %2143 = vrot.lane.b32.xlu0 %v2104, 64
        %v2144 = vpop.permute.xlu0 %2143
        %2145 = vrot.lane.b32.xlu0 %v2105, 64
        %v2146 = vpop.permute.xlu0 %2145
        %2147 = vrot.lane.b32.xlu0 %v2106, 64
        %v2148 = vpop.permute.xlu0 %2147
        %2149 = vrot.lane.b32.xlu0 %v2107, 64
        %v2150 = vpop.permute.xlu0 %2149
        %2151 = vrot.lane.b32.xlu0 %v2108, 64
        %v2152 = vpop.permute.xlu0 %2151
        %2153 = vrot.lane.b32.xlu0 %v2109, 64
        %v2154 = vpop.permute.xlu0 %2153
        %2155 = vrot.lane.b32.xlu0 %v2110, 64
        %v2156 = vpop.permute.xlu0 %2155
        %2157 = vrot.lane.b32.xlu0 %v2111, 64
        %v2158 = vpop.permute.xlu0 %2157
        %2159 = vrot.lane.b32.xlu0 %v2112, 64
        %v2160 = vpop.permute.xlu0 %2159
        %v2177 = vadd.f32 %v2017, %v2130
        %v2178 = vadd.f32 %v2018, %v2132
        %v2179 = vadd.f32 %v2019, %v2134
        %v2180 = vadd.f32 %v2020, %v2136
        %v2181 = vadd.f32 %v2021, %v2138
        %v2182 = vadd.f32 %v2022, %v2140
        %v2183 = vadd.f32 %v2023, %v2142
        %v2184 = vadd.f32 %v2024, %v2144
        %v2185 = vadd.f32 %v2025, %v2146
        %v2186 = vadd.f32 %v2026, %v2148
        %v2187 = vadd.f32 %v2027, %v2150
        %v2188 = vadd.f32 %v2028, %v2152
        %v2189 = vadd.f32 %v2029, %v2154
        %v2190 = vadd.f32 %v2030, %v2156
        %v2191 = vadd.f32 %v2031, %v2158
        %v2192 = vadd.f32 %v2032, %v2160
        %2193 = vst.msk [vmem:[#allocation2] sm:$0xff] %vm273, %v2177
        %2194 = vst.msk [vmem:[#allocation2 + $0x8] sm:$0xff] %vm273, %v2178
        %2195 = vst.msk [vmem:[#allocation2 + $0x10] sm:$0xff] %vm273, %v2179
        %2196 = vst.msk [vmem:[#allocation2 + $0x18] sm:$0xff] %vm273, %v2180
        %2197 = vst.msk [vmem:[#allocation2 + $0x20] sm:$0xff] %vm273, %v2181
        %2198 = vst.msk [vmem:[#allocation2 + $0x28] sm:$0xff] %vm273, %v2182
        %2199 = vst.msk [vmem:[#allocation2 + $0x30] sm:$0xff] %vm273, %v2183
        %2200 = vst.msk [vmem:[#allocation2 + $0x38] sm:$0xff] %vm273, %v2184
        %2201 = vst.msk [vmem:[#allocation2 + $0x40] sm:$0xff] %vm273, %v2185
        %2202 = vst.msk [vmem:[#allocation2 + $0x48] sm:$0xff] %vm273, %v2186
        %2203 = vst.msk [vmem:[#allocation2 + $0x50] sm:$0xff] %vm273, %v2187
        %2204 = vst.msk [vmem:[#allocation2 + $0x58] sm:$0xff] %vm273, %v2188
        %2205 = vst.msk [vmem:[#allocation2 + $0x60] sm:$0xff] %vm273, %v2189
        %2206 = vst.msk [vmem:[#allocation2 + $0x68] sm:$0xff] %vm273, %v2190
        %2207 = vst.msk [vmem:[#allocation2 + $0x70] sm:$0xff] %vm273, %v2191
        %2208 = vst.msk [vmem:[#allocation2 + $0x78] sm:$0xff] %vm273, %v2192
        %v2209 = vld [vmem:[%s1920 + $0x2] sm:$0xff]
        %v2210 = vld [vmem:[%s1920 + $0xa] sm:$0xff]
        %v2211 = vld [vmem:[%s1920 + $0x1a] sm:$0xff]
        %v2212 = vld [vmem:[%s1920 + $0x22] sm:$0xff]
        %v2213 = vld [vmem:[%s1920 + $0x32] sm:$0xff]
        %v2214 = vld [vmem:[%s1920 + $0x3a] sm:$0xff]
        %v2215 = vld [vmem:[%s1920 + $0x4a] sm:$0xff]
        %v2216 = vld [vmem:[%s1920 + $0x52] sm:$0xff]
        %v2217 = vld [vmem:[%s1920 + $0x62] sm:$0xff]
        %v2218 = vld [vmem:[%s1920 + $0x6a] sm:$0xff]
        %v2219 = vld [vmem:[%s1920 + $0x7a] sm:$0xff]
        %v2220 = vld [vmem:[%s1920 + $0x82] sm:$0xff]
        %v2221 = vld [vmem:[%s1920 + $0x92] sm:$0xff]
        %v2222 = vld [vmem:[%s1920 + $0x9a] sm:$0xff]
        %v2223 = vld [vmem:[%s1920 + $0xaa] sm:$0xff]
        %v2224 = vld [vmem:[%s1920 + $0xb2] sm:$0xff]
        %v2225 = vld [vmem:[#allocation2] sm:$0xff]
        %v2226 = vld [vmem:[#allocation2 + $0x8] sm:$0xff]
        %v2227 = vld [vmem:[#allocation2 + $0x10] sm:$0xff]
        %v2228 = vld [vmem:[#allocation2 + $0x18] sm:$0xff]
        %v2229 = vld [vmem:[#allocation2 + $0x20] sm:$0xff]
        %v2230 = vld [vmem:[#allocation2 + $0x28] sm:$0xff]
        %v2231 = vld [vmem:[#allocation2 + $0x30] sm:$0xff]
        %v2232 = vld [vmem:[#allocation2 + $0x38] sm:$0xff]
        %v2233 = vld [vmem:[#allocation2 + $0x40] sm:$0xff]
        %v2234 = vld [vmem:[#allocation2 + $0x48] sm:$0xff]
        %v2235 = vld [vmem:[#allocation2 + $0x50] sm:$0xff]
        %v2236 = vld [vmem:[#allocation2 + $0x58] sm:$0xff]
        %v2237 = vld [vmem:[#allocation2 + $0x60] sm:$0xff]
        %v2238 = vld [vmem:[#allocation2 + $0x68] sm:$0xff]
        %v2239 = vld [vmem:[#allocation2 + $0x70] sm:$0xff]
        %v2240 = vld [vmem:[#allocation2 + $0x78] sm:$0xff]
        %v2241 = vmul.f32 %v958, %v2209
        %v2242 = vmul.f32 %v963, %v2210
        %v2243 = vmul.f32 %v968, %v2211
        %v2244 = vmul.f32 %v973, %v2212
        %v2245 = vmul.f32 %v978, %v2213
        %v2246 = vmul.f32 %v983, %v2214
        %v2247 = vmul.f32 %v988, %v2215
        %v2248 = vmul.f32 %v993, %v2216
        %v2249 = vmul.f32 %v998, %v2217
        %v2250 = vmul.f32 %v1003, %v2218
        %v2251 = vmul.f32 %v1008, %v2219
        %v2252 = vmul.f32 %v1013, %v2220
        %v2253 = vmul.f32 %v1018, %v2221
        %v2254 = vmul.f32 %v1023, %v2222
        %v2255 = vmul.f32 %v1028, %v2223
        %v2256 = vmul.f32 %v1033, %v2224
        %v2257 = vadd.f32 %v2225, %v2241
        %v2258 = vadd.f32 %v2226, %v2242
        %v2259 = vadd.f32 %v2227, %v2243
        %v2260 = vadd.f32 %v2228, %v2244
        %v2261 = vadd.f32 %v2229, %v2245
        %v2262 = vadd.f32 %v2230, %v2246
        %v2263 = vadd.f32 %v2231, %v2247
        %v2264 = vadd.f32 %v2232, %v2248
        %v2265 = vadd.f32 %v2233, %v2249
        %v2266 = vadd.f32 %v2234, %v2250
        %v2267 = vadd.f32 %v2235, %v2251
        %v2268 = vadd.f32 %v2236, %v2252
        %v2269 = vadd.f32 %v2237, %v2253
        %v2270 = vadd.f32 %v2238, %v2254
        %v2271 = vadd.f32 %v2239, %v2255
        %v2272 = vadd.f32 %v2240, %v2256
        %2273 = vst.msk [vmem:[#allocation2] sm:$0xff] %vm273, %v2257
        %2274 = vst.msk [vmem:[#allocation2 + $0x8] sm:$0xff] %vm273, %v2258
        %2275 = vst.msk [vmem:[#allocation2 + $0x10] sm:$0xff] %vm273, %v2259
        %2276 = vst.msk [vmem:[#allocation2 + $0x18] sm:$0xff] %vm273, %v2260
        %2277 = vst.msk [vmem:[#allocation2 + $0x20] sm:$0xff] %vm273, %v2261
        %2278 = vst.msk [vmem:[#allocation2 + $0x28] sm:$0xff] %vm273, %v2262
        %2279 = vst.msk [vmem:[#allocation2 + $0x30] sm:$0xff] %vm273, %v2263
        %2280 = vst.msk [vmem:[#allocation2 + $0x38] sm:$0xff] %vm273, %v2264
        %2281 = vst.msk [vmem:[#allocation2 + $0x40] sm:$0xff] %vm273, %v2265
        %2282 = vst.msk [vmem:[#allocation2 + $0x48] sm:$0xff] %vm273, %v2266
        %2283 = vst.msk [vmem:[#allocation2 + $0x50] sm:$0xff] %vm273, %v2267
        %2284 = vst.msk [vmem:[#allocation2 + $0x58] sm:$0xff] %vm273, %v2268
        %2285 = vst.msk [vmem:[#allocation2 + $0x60] sm:$0xff] %vm273, %v2269
        %2286 = vst.msk [vmem:[#allocation2 + $0x68] sm:$0xff] %vm273, %v2270
        %2287 = vst.msk [vmem:[#allocation2 + $0x70] sm:$0xff] %vm273, %v2271
        %2288 = vst.msk [vmem:[#allocation2 + $0x78] sm:$0xff] %vm273, %v2272
        %v2289 = vld [vmem:[#allocation2] sm:$0xff]
        %v2290 = vld [vmem:[#allocation2 + $0x8] sm:$0xff]
        %v2291 = vld [vmem:[#allocation2 + $0x10] sm:$0xff]
        %v2292 = vld [vmem:[#allocation2 + $0x18] sm:$0xff]
        %v2293 = vld [vmem:[#allocation2 + $0x20] sm:$0xff]
        %v2294 = vld [vmem:[#allocation2 + $0x28] sm:$0xff]
        %v2295 = vld [vmem:[#allocation2 + $0x30] sm:$0xff]
        %v2296 = vld [vmem:[#allocation2 + $0x38] sm:$0xff]
        %v2297 = vld [vmem:[#allocation2 + $0x40] sm:$0xff]
        %v2298 = vld [vmem:[#allocation2 + $0x48] sm:$0xff]
        %v2299 = vld [vmem:[#allocation2 + $0x50] sm:$0xff]
        %v2300 = vld [vmem:[#allocation2 + $0x58] sm:$0xff]
        %v2301 = vld [vmem:[#allocation2 + $0x60] sm:$0xff]
        %v2302 = vld [vmem:[#allocation2 + $0x68] sm:$0xff]
        %v2303 = vld [vmem:[#allocation2 + $0x70] sm:$0xff]
        %v2304 = vld [vmem:[#allocation2 + $0x78] sm:$0xff]
        %2305 = vst.msk [vmem:[%s231] sm:$0xff] %vm273, %v2289
        %2306 = vst.msk [vmem:[%s231 + $0x8] sm:$0xff] %vm273, %v2290
        %2307 = vst.msk [vmem:[%s231 + $0x10] sm:$0xff] %vm273, %v2291
        %2308 = vst.msk [vmem:[%s231 + $0x18] sm:$0xff] %vm273, %v2292
        %2309 = vst.msk [vmem:[%s231 + $0x20] sm:$0xff] %vm273, %v2293
        %2310 = vst.msk [vmem:[%s231 + $0x28] sm:$0xff] %vm273, %v2294
        %2311 = vst.msk [vmem:[%s231 + $0x30] sm:$0xff] %vm273, %v2295
        %2312 = vst.msk [vmem:[%s231 + $0x38] sm:$0xff] %vm273, %v2296
        %2313 = vst.msk [vmem:[%s231 + $0x40] sm:$0xff] %vm273, %v2297
        %2314 = vst.msk [vmem:[%s231 + $0x48] sm:$0xff] %vm273, %v2298
        %2315 = vst.msk [vmem:[%s231 + $0x50] sm:$0xff] %vm273, %v2299
        %2316 = vst.msk [vmem:[%s231 + $0x58] sm:$0xff] %vm273, %v2300
        %2317 = vst.msk [vmem:[%s231 + $0x60] sm:$0xff] %vm273, %v2301
        %2318 = vst.msk [vmem:[%s231 + $0x68] sm:$0xff] %vm273, %v2302
        %2319 = vst.msk [vmem:[%s231 + $0x70] sm:$0xff] %vm273, %v2303
        %2320 = vst.msk [vmem:[%s231 + $0x78] sm:$0xff] %vm273, %v2304
        %s2321 = sand.u32 %s151, 1
        %s2322 = scalar_lea.sflag [#allocation4], %s2321
        %s2323 = sand.u32 %s151, 1
        %s2324 = smul.addr %s2323, 128
        %s2325 = scalar_lea.vmem [#allocation3], %s2324
        // Predicated region
        $region41: #{tpu_custom_call.1} parent=39 // pred_check
          %p2326 = pneg %p161
        $region42: #{tpu_custom_call.1} parent=39 // pred_check_branch
          %2328 = sbr.rel (%p2326) target = $region44
        $region43: #{tpu_custom_call.1} parent=39 // pred_region
          %s2329 = smul.u32 8, %s24
          %s2331 = ssub.s32 2048, 2048
          %2332 = vsyncadd %s2322, %s2331
          %s2333 = smul.addr %s2329, 2
          %s2334 = smul.addr %s23, 32
          %s2335 = sadd.s32 %s2333, %s2334
          %s2336 = smul.addr %s2335, 128
          %s2337 = scalar_lea.hbm %s5, %s2336
          %s2338 = sshll.u32 %s2325, 4
          %s2339 = int_to_ptr.vmem [resolvable:$true] %s2338
          %2344 = dma.vmem_to_hbm [thread:$0]  %s2339, 2048, %s2337, %s2322, 128, 128, 8
        $region44: #{tpu_custom_call.1} parent=39 // pred_fallthru
          _
      $region40: #{tpu_custom_call.1} parent=5 // pred_fallthru
        _
      %p2345 = scmp.le.s32.totalorder 2, %s14
      // Predicated region
      $region45: #{tpu_custom_call.1} parent=5 // pred_check
        %p2346 = pneg %p2345
      $region46: #{tpu_custom_call.1} parent=5 // pred_check_branch
        %2348 = sbr.rel (%p2346) target = $region48
      $region47: #{tpu_custom_call.1} parent=5 // pred_region
        %s2349 = ssub.s32 %s14, 2
        // Predicated region
        $region49: #{tpu_custom_call.1} parent=47 // pred_check
          %p2350 = pneg %p167
        $region50: #{tpu_custom_call.1} parent=47 // pred_check_branch
          %2352 = sbr.rel (%p2350) target = $region52
        $region51: #{tpu_custom_call.1} parent=47 // pred_region
          %s2353 = sand.u32 %s152, 1
          %s2354 = scalar_lea.sflag [#allocation4], %s2353
          %s2355 = sand.u32 %s152, 1
          %s2356 = smul.addr %s2355, 128
          %s2357 = scalar_lea.vmem [#allocation3], %s2356
          %2358 = dma.done %s2354, 2048
        $region52: #{tpu_custom_call.1} parent=47 // pred_fallthru
          _
      $region48: #{tpu_custom_call.1} parent=5 // pred_fallthru
        _
    $region6: #{tpu_custom_call.1} parent=1 // loop_footer
      %s18 = sadd.s32 1, %s14
    $region7: #{tpu_custom_call.1} parent=1 // loop_footer_branch
      %13 = sbr.rel target = $region3
    $region8: #{tpu_custom_call.1} parent=1 // loop_exit
      _
    %2359 = vsyncpa [#allocation4], 1
    %s2360 = scalar_lea.sflag [#allocation4], 1
    %2361 = vsyncpa %s2360, 1

</llo_original>
